<compile_context>
chip_gen: v7x
topology: tpu7x:2x2x1
jax: 0.10.0
libtpu: 0.0.40
codegen_flags: <defaults>
</compile_context>

<pallas_src>
import math

import jax
import jax.numpy as jnp
from jax.experimental import pallas as pl
from jax.experimental.pallas import tpu as pltpu

LOG_STD_MAX = 2.0
LOG_STD_MIN = -20.0
UNIFORM_SIGMA = 3.46
_HALF_LOG_2PI = 0.5 * math.log(2.0 * math.pi)


def scale_input(x, a, b):
    return UNIFORM_SIGMA * ((x - a) / (b - a) - 0.5)


# ------------------------------ fused kernel ------------------------------- #

def _build_actor_kernel(*, block_meta, n_fc, act_low, act_high):
    """block_meta: tuple of (cin, cout, identity_skip) per ReduceBlock."""
    n_blocks = len(block_meta)

    def kernel(*refs):
        n_total = len(refs)
        scr_refs = refs[n_total - n_blocks:]
        pi_ref = refs[n_total - n_blocks - 2]
        logp_ref = refs[n_total - n_blocks - 1]
        it = iter(refs[: n_total - n_blocks - 2])

        obs_rows_ref = next(it)       # (N*T, C0), rows ordered (n, t), chans on lanes
        obs_last_ref = next(it)       # (N, C0)   == obs[:, :, -1]
        eps_ref = next(it)            # (N, act_dim) rsample noise (zeros = deterministic)

        x = scale_input(obs_rows_ref[...], act_low, act_high)
        last = scale_input(obs_last_ref[...], act_low, act_high)

        # ------------------------ halving conv blocks ----------------------- #
        for k, (cin, cout, identity_skip) in enumerate(block_meta):
            w_conv = next(it)[...]    # (2*cin, cout): [even-tap rows; odd-tap rows]
            b_conv = next(it)[...]    # (1, cout)
            if not identity_skip:
                w_skip = next(it)[...]  # (cin, cout)
                b_skip = next(it)[...]  # (1, cout)

            rows = x.shape[0]
            half = rows // 2
            scr = scr_refs[k]
            scr[...] = x                                    # park level k activations
            xe = scr[pl.ds(0, half, stride=2), :]           # even time samples
            xo = scr[pl.ds(1, half, stride=2), :]           # odd time samples

            # Conv1d(k=2, s=2) as a single packed matmul, then ReLU.
            x_cat = jnp.concatenate([xe, xo], axis=-1)      # (half, 2*cin)
            conv = jnp.dot(x_cat, w_conv,
                           preferred_element_type=jnp.float32) + b_conv
            conv = jnp.maximum(conv, 0.0)

            pool = 0.5 * (xe + xo)                          # AvgPool1d(2, 2)
            if identity_skip:
                skip = pool                                 # conv_1x1 == Identity (VPU only)
            else:
                skip = jnp.dot(pool, w_skip,
                               preferred_element_type=jnp.float32) + b_skip
            x = conv + skip                                 # (half, cout)

        # T has been reduced to 1: x is (N, C_last); append last scaled obs sample.
        h = jnp.concatenate([x, last], axis=-1)

        # ------------------------------ FC stack ---------------------------- #
        for _ in range(n_fc):
            w = next(it)[...]
            b = next(it)[...]
            h = jnp.maximum(jnp.dot(h, w, preferred_element_type=jnp.float32) + b, 0.0)

        w_mu = next(it)[...]
        b_mu = next(it)[...]
        w_ls = next(it)[...]
        b_ls = next(it)[...]

        mu = jnp.dot(h, w_mu, preferred_element_type=jnp.float32) + b_mu
        log_std = jnp.dot(h, w_ls, preferred_element_type=jnp.float32) + b_ls
        log_std = jnp.clip(log_std, LOG_STD_MIN, LOG_STD_MAX)
        std = jnp.exp(log_std)

        pre = mu + std * eps_ref[...]                       # rsample (eps == 0 -> mu)

        # Normal(mu, std).log_prob(pre).sum(-1)
        z = (pre - mu) / std
        logp = jnp.sum(-0.5 * z * z - log_std - _HALF_LOG_2PI, axis=-1, keepdims=True)
        # tanh-squash correction with a numerically-stable softplus
        u = -2.0 * pre
        softplus_u = jnp.maximum(u, 0.0) + jnp.log(1.0 + jnp.exp(-jnp.abs(u)))
        logp = logp - jnp.sum(2.0 * (math.log(2.0) - pre - softplus_u),
                              axis=-1, keepdims=True)
        logp = logp - math.log(0.5 * (act_high - act_low))

        pi = jnp.tanh(pre)
        pi = act_low + 0.5 * (pi + 1.0) * (act_high - act_low)

        pi_ref[...] = pi
        logp_ref[...] = logp

    return kernel


# -------------------------------- wrapper ----------------------------------- #

def squashed_gaussian_actor(obs, params, act_low, act_high, *,
                            eps=None, deterministic=False, with_logprob=True):
    """obs: (N, C0, T) float32. Returns (pi_action (N, act_dim), logp_pi (N,))."""
    blocks, fcs, mu_head, ls_head = params
    N, c0, t_len = obs.shape
    act_dim = mu_head[0].shape[1]

    if deterministic or eps is None:
        eps = jnp.zeros((N, act_dim), jnp.float32)

    n_blocks = len(blocks)
    assert t_len == (1 << n_blocks), "halving stack must reduce T to exactly 1"
    # TODO(synk): odd-length replicate-padding branch of ReduceBlock not implemented.

    # single layout change in the wrapper: rows ordered (n, t), channels on lanes
    obs_rows = jnp.transpose(obs, (0, 2, 1)).reshape(N * t_len, c0)
    obs_last = obs[:, :, -1]

    block_meta = []
    flat = []
    cin = c0
    for bp in blocks:
        cout = bp[0].shape[1]
        block_meta.append((cin, cout, len(bp) == 2))
        flat.extend(bp)
        cin = cout
    for wb in fcs:
        flat.extend(wb)
    flat.extend(mu_head)
    flat.extend(ls_head)

    scratch = [pltpu.VMEM(((N * t_len) >> k, block_meta[k][0]), jnp.float32)
               for k in range(n_blocks)]

    kernel = _build_actor_kernel(
        block_meta=tuple(block_meta), n_fc=len(fcs),
        act_low=float(act_low), act_high=float(act_high))

    pi, logp = pl.pallas_call(
        kernel,
        out_shape=(jax.ShapeDtypeStruct((N, act_dim), jnp.float32),
                   jax.ShapeDtypeStruct((N, 1), jnp.float32)),
        in_specs=[pl.BlockSpec(memory_space=pltpu.MemorySpace.VMEM)] * (3 + len(flat)),
        out_specs=(pl.BlockSpec(memory_space=pltpu.MemorySpace.VMEM),
                   pl.BlockSpec(memory_space=pltpu.MemorySpace.VMEM)),
        scratch_shapes=scratch,
    )(obs_rows, obs_last, eps, *flat)

    logp = jnp.squeeze(logp, -1)
    if not with_logprob:
        logp = None
    return pi, logp


# ----------------------- deterministic parameter init ----------------------- #

def init_params(key, obs_dim, act_dim, channel_sizes, fc_sizes):
    c0, _ = obs_dim
    chans = [c0] + list(channel_sizes)
    blocks = []
    for i in range(len(channel_sizes)):
        cin, cout = chans[i], chans[i + 1]
        key, k1, k2, k3, k4 = jax.random.split(key, 5)
        bound = 1.0 / math.sqrt(cin * 2)                  # Conv1d(k=2) default init
        wc = jax.random.uniform(k1, (cout, cin, 2), jnp.float32, -bound, bound)
        bc = jax.random.uniform(k2, (cout,), jnp.float32, -bound, bound)
        # pack the two kernel taps along the contraction axis: rows [0:cin] hit the
        # even time sample, rows [cin:2*cin] the odd one.
        w_conv = jnp.concatenate([wc[:, :, 0].T, wc[:, :, 1].T], axis=0)
        if cin == cout:                                   # conv_1x1 == Identity
            blocks.append((w_conv, bc.reshape(1, cout)))
        else:
            b1b = 1.0 / math.sqrt(cin)
            w1 = jax.random.uniform(k3, (cout, cin), jnp.float32, -b1b, b1b).T
            b1 = jax.random.uniform(k4, (cout,), jnp.float32, -b1b, b1b)
            blocks.append((w_conv, bc.reshape(1, cout), w1, b1.reshape(1, cout)))

    fcs = []
    dims = [channel_sizes[-1] + act_dim] + list(fc_sizes)
    for i in range(len(fc_sizes)):
        key, k1, k2 = jax.random.split(key, 3)
        bound = 1.0 / math.sqrt(dims[i])
        w = jax.random.uniform(k1, (dims[i + 1], dims[i]), jnp.float32, -bound, bound).T
        b = jax.random.uniform(k2, (dims[i + 1],), jnp.float32, -bound, bound)
        fcs.append((w, b.reshape(1, dims[i + 1])))

    final = fc_sizes[-1] if len(fc_sizes) else dims[0]
    heads = []
    for _ in range(2):                                    # mu head, log_std head
        key, k1, k2 = jax.random.split(key, 3)
        bound = 1.0 / math.sqrt(final)
        w = jax.random.uniform(k1, (act_dim, final), jnp.float32, -bound, bound).T
        b = jax.random.uniform(k2, (act_dim,), jnp.float32, -bound, bound)
        heads.append((w, b.reshape(1, act_dim)))
    return blocks, fcs, heads[0], heads[1]


# ---------------------------- pure-JAX reference ----------------------------- #

def actor_reference(obs, eps, params, act_low, act_high):
    blocks, fcs, (w_mu, b_mu), (w_ls, b_ls) = params
    x = scale_input(obs, act_low, act_high)               # (N, C, T)
    last = x[:, :, -1]                                    # (N, C0)
    for bp in blocks:
        w_conv, bc = bp[0], bp[1]
        cin = x.shape[1]
        xe, xo = x[:, :, 0::2], x[:, :, 1::2]
        conv = (jnp.einsum('nct,co->not', xe, w_conv[:cin])
                + jnp.einsum('nct,co->not', xo, w_conv[cin:])
                + bc.reshape(1, -1, 1))
        conv = jnp.maximum(conv, 0.0)
        pool = 0.5 * (xe + xo)
        if len(bp) == 2:
            skip = pool
        else:
            skip = jnp.einsum('nct,co->not', pool, bp[2]) + bp[3].reshape(1, -1, 1)
        x = conv + skip
    h = x.reshape(x.shape[0], -1)                         # (N, C_last) since T -> 1
    h = jnp.concatenate([h, last], axis=-1)
    for (w, b) in fcs:
        h = jnp.maximum(h @ w + b, 0.0)
    mu = h @ w_mu + b_mu
    log_std = jnp.clip(h @ w_ls + b_ls, LOG_STD_MIN, LOG_STD_MAX)
    std = jnp.exp(log_std)
    pre = mu + std * eps
    z = (pre - mu) / std
    logp = jnp.sum(-0.5 * z * z - log_std - _HALF_LOG_2PI, axis=-1)
    u = -2.0 * pre
    softplus_u = jnp.maximum(u, 0.0) + jnp.log(1.0 + jnp.exp(-jnp.abs(u)))
    logp = logp - jnp.sum(2.0 * (math.log(2.0) - pre - softplus_u), axis=-1)
    logp = logp - math.log(0.5 * (act_high - act_low))
    pi = jnp.tanh(pre)
    pi = act_low + 0.5 * (pi + 1.0) * (act_high - act_low)
    return pi, logp


# ----------------------------------- main ------------------------------------ #

if __name__ == "__main__":
    # module requires obs channels == act_dim (it concatenates scaled_obs[:, :, -1])
    obs_dim = (4, 16)                 # (channels, timeseries length)
    act_dim = 4
    channel_sizes = (8, 8, 16, 16)    # 16 -> 8 -> 4 -> 2 -> 1
    fc_sizes = (32, 32)
    act_low, act_high = -2.0, 2.0
    N = 2

    key = jax.random.PRNGKey(0)
    kp, ko, ke = jax.random.split(key, 3)
    params = init_params(kp, obs_dim, act_dim, channel_sizes, fc_sizes)
    obs = jax.random.uniform(ko, (N,) + obs_dim, jnp.float32, act_low, act_high)
    eps = jax.random.normal(ke, (N, act_dim), jnp.float32)   # rsample noise

    pi, logp = squashed_gaussian_actor(obs, params, act_low, act_high,
                                       eps=eps, deterministic=False,
                                       with_logprob=True)
    pi = jax.block_until_ready(pi)
    logp = jax.block_until_ready(logp)

    pi_ref, logp_ref = actor_reference(obs, eps, params, act_low, act_high)
    pi_ref = jax.block_until_ready(pi_ref)
    logp_ref = jax.block_until_ready(logp_ref)

    assert pi.shape == (N, act_dim) and logp.shape == (N,)
    assert jnp.allclose(pi, pi_ref, rtol=1e-3, atol=1e-3), (pi, pi_ref)
    assert jnp.allclose(logp, logp_ref, rtol=1e-3, atol=1e-3), (logp, logp_ref)
    print("KERNEL_OK")
</pallas_src>

<mosaic_0001>
module attributes {stable_mosaic.version = 11 : i64} {
  func.func @kernel(%arg0: memref<32x4xf32, #tpu.memory_space<vmem>>, %arg1: memref<2x4xf32, #tpu.memory_space<vmem>>, %arg2: memref<2x4xf32, #tpu.memory_space<vmem>>, %arg3: memref<8x8xf32, #tpu.memory_space<vmem>>, %arg4: memref<1x8xf32, #tpu.memory_space<vmem>>, %arg5: memref<4x8xf32, #tpu.memory_space<vmem>>, %arg6: memref<1x8xf32, #tpu.memory_space<vmem>>, %arg7: memref<16x8xf32, #tpu.memory_space<vmem>>, %arg8: memref<1x8xf32, #tpu.memory_space<vmem>>, %arg9: memref<16x16xf32, #tpu.memory_space<vmem>>, %arg10: memref<1x16xf32, #tpu.memory_space<vmem>>, %arg11: memref<8x16xf32, #tpu.memory_space<vmem>>, %arg12: memref<1x16xf32, #tpu.memory_space<vmem>>, %arg13: memref<32x16xf32, #tpu.memory_space<vmem>>, %arg14: memref<1x16xf32, #tpu.memory_space<vmem>>, %arg15: memref<20x32xf32, #tpu.memory_space<vmem>>, %arg16: memref<1x32xf32, #tpu.memory_space<vmem>>, %arg17: memref<32x32xf32, #tpu.memory_space<vmem>>, %arg18: memref<1x32xf32, #tpu.memory_space<vmem>>, %arg19: memref<32x4xf32, #tpu.memory_space<vmem>>, %arg20: memref<1x4xf32, #tpu.memory_space<vmem>>, %arg21: memref<32x4xf32, #tpu.memory_space<vmem>>, %arg22: memref<1x4xf32, #tpu.memory_space<vmem>>, %arg23: memref<2x4xf32, #tpu.memory_space<vmem>>, %arg24: memref<2x1xf32, #tpu.memory_space<vmem>>, %arg25: memref<32x4xf32, #tpu.memory_space<vmem>>, %arg26: memref<16x8xf32, #tpu.memory_space<vmem>>, %arg27: memref<8x8xf32, #tpu.memory_space<vmem>>, %arg28: memref<4x16xf32, #tpu.memory_space<vmem>>) attributes {dimension_semantics = [], scalar_prefetch = 0 : i64, scratch_operands = 4 : i64, tpu.core_type = #tpu.core_type<tc>} {
    %c0 = arith.constant 0 : index
    %c0_0 = arith.constant 0 : index
    %0 = vector.load %arg0[%c0, %c0_0] : memref<32x4xf32, #tpu.memory_space<vmem>>, vector<32x4xf32>
    %cst = arith.constant -2.000000e+00 : f32
    %1 = vector.broadcast %cst : f32 to vector<32x4xf32>
    %2 = arith.subf %0, %1 : vector<32x4xf32>
    %cst_1 = arith.constant 4.000000e+00 : f32
    %3 = vector.broadcast %cst_1 : f32 to vector<32x4xf32>
    %4 = arith.divf %2, %3 : vector<32x4xf32>
    %cst_2 = arith.constant 5.000000e-01 : f32
    %5 = vector.broadcast %cst_2 : f32 to vector<32x4xf32>
    %6 = arith.subf %4, %5 : vector<32x4xf32>
    %cst_3 = arith.constant 3.460000e+00 : f32
    %7 = vector.broadcast %cst_3 : f32 to vector<32x4xf32>
    %8 = arith.mulf %7, %6 : vector<32x4xf32>
    %c0_4 = arith.constant 0 : index
    %c0_5 = arith.constant 0 : index
    %9 = vector.load %arg1[%c0_4, %c0_5] : memref<2x4xf32, #tpu.memory_space<vmem>>, vector<2x4xf32>
    %cst_6 = arith.constant -2.000000e+00 : f32
    %10 = vector.broadcast %cst_6 : f32 to vector<2x4xf32>
    %11 = arith.subf %9, %10 : vector<2x4xf32>
    %cst_7 = arith.constant 4.000000e+00 : f32
    %12 = vector.broadcast %cst_7 : f32 to vector<2x4xf32>
    %13 = arith.divf %11, %12 : vector<2x4xf32>
    %cst_8 = arith.constant 5.000000e-01 : f32
    %14 = vector.broadcast %cst_8 : f32 to vector<2x4xf32>
    %15 = arith.subf %13, %14 : vector<2x4xf32>
    %cst_9 = arith.constant 3.460000e+00 : f32
    %16 = vector.broadcast %cst_9 : f32 to vector<2x4xf32>
    %17 = arith.mulf %16, %15 : vector<2x4xf32>
    %c0_10 = arith.constant 0 : index
    %c0_11 = arith.constant 0 : index
    %18 = vector.load %arg3[%c0_10, %c0_11] : memref<8x8xf32, #tpu.memory_space<vmem>>, vector<8x8xf32>
    %c0_12 = arith.constant 0 : index
    %c0_13 = arith.constant 0 : index
    %19 = vector.load %arg4[%c0_12, %c0_13] : memref<1x8xf32, #tpu.memory_space<vmem>>, vector<1x8xf32>
    %c0_14 = arith.constant 0 : index
    %c0_15 = arith.constant 0 : index
    %20 = vector.load %arg5[%c0_14, %c0_15] : memref<4x8xf32, #tpu.memory_space<vmem>>, vector<4x8xf32>
    %c0_16 = arith.constant 0 : index
    %c0_17 = arith.constant 0 : index
    %21 = vector.load %arg6[%c0_16, %c0_17] : memref<1x8xf32, #tpu.memory_space<vmem>>, vector<1x8xf32>
    %c0_18 = arith.constant 0 : index
    %c0_19 = arith.constant 0 : index
    %22 = vector.load %arg25[%c0_18, %c0_19] : memref<32x4xf32, #tpu.memory_space<vmem>>, vector<32x4xf32>
    tpu.vector_store %arg25[%c0_18, %c0_19], %8 {strides = array<i32>} : memref<32x4xf32, #tpu.memory_space<vmem>>, vector<32x4xf32>,
    %c0_20 = arith.constant 0 : index
    %c0_21 = arith.constant 0 : index
    %23 = tpu.strided_load %arg25[%c0_20, %c0_21] {strides = array<i32: 2, 1>} : memref<32x4xf32, #tpu.memory_space<vmem>>, vector<16x4xf32>
    %c1 = arith.constant 1 : index
    %c0_22 = arith.constant 0 : index
    %24 = tpu.strided_load %arg25[%c1, %c0_22] {strides = array<i32: 2, 1>} : memref<32x4xf32, #tpu.memory_space<vmem>>, vector<16x4xf32>
    %25 = tpu.concatenate %23, %24 in 1 : vector<16x4xf32>, vector<16x4xf32> -> vector<16x8xf32>
    %cst_23 = arith.constant dense<0.000000e+00> : vector<16x8xf32>
    %26 = tpu.matmul %25, %18, %cst_23 {dimension_numbers = #tpu.dot_dimension_numbers<[1], [0], [0], [1], [0, 0, 1, 1], [], []>} : vector<16x8xf32>, vector<8x8xf32>, vector<16x8xf32> -> vector<16x8xf32>
    %27 = vector.broadcast %19 : vector<1x8xf32> to vector<16x8xf32>
    %28 = arith.addf %26, %27 : vector<16x8xf32>
    %cst_24 = arith.constant 0.000000e+00 : f32
    %29 = vector.broadcast %cst_24 : f32 to vector<16x8xf32>
    %30 = arith.maximumf %28, %29 : vector<16x8xf32>
    %31 = arith.addf %23, %24 : vector<16x4xf32>
    %cst_25 = arith.constant 5.000000e-01 : f32
    %32 = vector.broadcast %cst_25 : f32 to vector<16x4xf32>
    %33 = arith.mulf %32, %31 : vector<16x4xf32>
    %cst_26 = arith.constant dense<0.000000e+00> : vector<16x8xf32>
    %34 = tpu.matmul %33, %20, %cst_26 {dimension_numbers = #tpu.dot_dimension_numbers<[1], [0], [0], [1], [0, 0, 1, 1], [], []>} : vector<16x4xf32>, vector<4x8xf32>, vector<16x8xf32> -> vector<16x8xf32>
    %35 = vector.broadcast %21 : vector<1x8xf32> to vector<16x8xf32>
    %36 = arith.addf %34, %35 : vector<16x8xf32>
    %37 = arith.addf %30, %36 : vector<16x8xf32>
    %c0_27 = arith.constant 0 : index
    %c0_28 = arith.constant 0 : index
    %38 = vector.load %arg7[%c0_27, %c0_28] : memref<16x8xf32, #tpu.memory_space<vmem>>, vector<16x8xf32>
    %c0_29 = arith.constant 0 : index
    %c0_30 = arith.constant 0 : index
    %39 = vector.load %arg8[%c0_29, %c0_30] : memref<1x8xf32, #tpu.memory_space<vmem>>, vector<1x8xf32>
    %c0_31 = arith.constant 0 : index
    %c0_32 = arith.constant 0 : index
    %40 = vector.load %arg26[%c0_31, %c0_32] : memref<16x8xf32, #tpu.memory_space<vmem>>, vector<16x8xf32>
    tpu.vector_store %arg26[%c0_31, %c0_32], %37 {strides = array<i32>} : memref<16x8xf32, #tpu.memory_space<vmem>>, vector<16x8xf32>,
    %c0_33 = arith.constant 0 : index
    %c0_34 = arith.constant 0 : index
    %41 = tpu.strided_load %arg26[%c0_33, %c0_34] {strides = array<i32: 2, 1>} : memref<16x8xf32, #tpu.memory_space<vmem>>, vector<8x8xf32>
    %c1_35 = arith.constant 1 : index
    %c0_36 = arith.constant 0 : index
    %42 = tpu.strided_load %arg26[%c1_35, %c0_36] {strides = array<i32: 2, 1>} : memref<16x8xf32, #tpu.memory_space<vmem>>, vector<8x8xf32>
    %43 = tpu.concatenate %41, %42 in 1 : vector<8x8xf32>, vector<8x8xf32> -> vector<8x16xf32>
    %cst_37 = arith.constant dense<0.000000e+00> : vector<8x8xf32>
    %44 = tpu.matmul %43, %38, %cst_37 {dimension_numbers = #tpu.dot_dimension_numbers<[1], [0], [0], [1], [0, 0, 1, 1], [], []>} : vector<8x16xf32>, vector<16x8xf32>, vector<8x8xf32> -> vector<8x8xf32>
    %45 = vector.broadcast %39 : vector<1x8xf32> to vector<8x8xf32>
    %46 = arith.addf %44, %45 : vector<8x8xf32>
    %cst_38 = arith.constant 0.000000e+00 : f32
    %47 = vector.broadcast %cst_38 : f32 to vector<8x8xf32>
    %48 = arith.maximumf %46, %47 : vector<8x8xf32>
    %49 = arith.addf %41, %42 : vector<8x8xf32>
    %cst_39 = arith.constant 5.000000e-01 : f32
    %50 = vector.broadcast %cst_39 : f32 to vector<8x8xf32>
    %51 = arith.mulf %50, %49 : vector<8x8xf32>
    %52 = arith.addf %48, %51 : vector<8x8xf32>
    %c0_40 = arith.constant 0 : index
    %c0_41 = arith.constant 0 : index
    %53 = vector.load %arg9[%c0_40, %c0_41] : memref<16x16xf32, #tpu.memory_space<vmem>>, vector<16x16xf32>
    %c0_42 = arith.constant 0 : index
    %c0_43 = arith.constant 0 : index
    %54 = vector.load %arg10[%c0_42, %c0_43] : memref<1x16xf32, #tpu.memory_space<vmem>>, vector<1x16xf32>
    %c0_44 = arith.constant 0 : index
    %c0_45 = arith.constant 0 : index
    %55 = vector.load %arg11[%c0_44, %c0_45] : memref<8x16xf32, #tpu.memory_space<vmem>>, vector<8x16xf32>
    %c0_46 = arith.constant 0 : index
    %c0_47 = arith.constant 0 : index
    %56 = vector.load %arg12[%c0_46, %c0_47] : memref<1x16xf32, #tpu.memory_space<vmem>>, vector<1x16xf32>
    %c0_48 = arith.constant 0 : index
    %c0_49 = arith.constant 0 : index
    %57 = vector.load %arg27[%c0_48, %c0_49] : memref<8x8xf32, #tpu.memory_space<vmem>>, vector<8x8xf32>
    tpu.vector_store %arg27[%c0_48, %c0_49], %52 {strides = array<i32>} : memref<8x8xf32, #tpu.memory_space<vmem>>, vector<8x8xf32>,
    %c0_50 = arith.constant 0 : index
    %c0_51 = arith.constant 0 : index
    %58 = tpu.strided_load %arg27[%c0_50, %c0_51] {strides = array<i32: 2, 1>} : memref<8x8xf32, #tpu.memory_space<vmem>>, vector<4x8xf32>
    %c1_52 = arith.constant 1 : index
    %c0_53 = arith.constant 0 : index
    %59 = tpu.strided_load %arg27[%c1_52, %c0_53] {strides = array<i32: 2, 1>} : memref<8x8xf32, #tpu.memory_space<vmem>>, vector<4x8xf32>
    %60 = tpu.concatenate %58, %59 in 1 : vector<4x8xf32>, vector<4x8xf32> -> vector<4x16xf32>
    %cst_54 = arith.constant dense<0.000000e+00> : vector<4x16xf32>
    %61 = tpu.matmul %60, %53, %cst_54 {dimension_numbers = #tpu.dot_dimension_numbers<[1], [0], [0], [1], [0, 0, 1, 1], [], []>} : vector<4x16xf32>, vector<16x16xf32>, vector<4x16xf32> -> vector<4x16xf32>
    %62 = vector.broadcast %54 : vector<1x16xf32> to vector<4x16xf32>
    %63 = arith.addf %61, %62 : vector<4x16xf32>
    %cst_55 = arith.constant 0.000000e+00 : f32
    %64 = vector.broadcast %cst_55 : f32 to vector<4x16xf32>
    %65 = arith.maximumf %63, %64 : vector<4x16xf32>
    %66 = arith.addf %58, %59 : vector<4x8xf32>
    %cst_56 = arith.constant 5.000000e-01 : f32
    %67 = vector.broadcast %cst_56 : f32 to vector<4x8xf32>
    %68 = arith.mulf %67, %66 : vector<4x8xf32>
    %cst_57 = arith.constant dense<0.000000e+00> : vector<4x16xf32>
    %69 = tpu.matmul %68, %55, %cst_57 {dimension_numbers = #tpu.dot_dimension_numbers<[1], [0], [0], [1], [0, 0, 1, 1], [], []>} : vector<4x8xf32>, vector<8x16xf32>, vector<4x16xf32> -> vector<4x16xf32>
    %70 = vector.broadcast %56 : vector<1x16xf32> to vector<4x16xf32>
    %71 = arith.addf %69, %70 : vector<4x16xf32>
    %72 = arith.addf %65, %71 : vector<4x16xf32>
    %c0_58 = arith.constant 0 : index
    %c0_59 = arith.constant 0 : index
    %73 = vector.load %arg13[%c0_58, %c0_59] : memref<32x16xf32, #tpu.memory_space<vmem>>, vector<32x16xf32>
    %c0_60 = arith.constant 0 : index
    %c0_61 = arith.constant 0 : index
    %74 = vector.load %arg14[%c0_60, %c0_61] : memref<1x16xf32, #tpu.memory_space<vmem>>, vector<1x16xf32>
    %c0_62 = arith.constant 0 : index
    %c0_63 = arith.constant 0 : index
    %75 = vector.load %arg28[%c0_62, %c0_63] : memref<4x16xf32, #tpu.memory_space<vmem>>, vector<4x16xf32>
    tpu.vector_store %arg28[%c0_62, %c0_63], %72 {strides = array<i32>} : memref<4x16xf32, #tpu.memory_space<vmem>>, vector<4x16xf32>,
    %c0_64 = arith.constant 0 : index
    %c0_65 = arith.constant 0 : index
    %76 = tpu.strided_load %arg28[%c0_64, %c0_65] {strides = array<i32: 2, 1>} : memref<4x16xf32, #tpu.memory_space<vmem>>, vector<2x16xf32>
    %c1_66 = arith.constant 1 : index
    %c0_67 = arith.constant 0 : index
    %77 = tpu.strided_load %arg28[%c1_66, %c0_67] {strides = array<i32: 2, 1>} : memref<4x16xf32, #tpu.memory_space<vmem>>, vector<2x16xf32>
    %78 = tpu.concatenate %76, %77 in 1 : vector<2x16xf32>, vector<2x16xf32> -> vector<2x32xf32>
    %cst_68 = arith.constant dense<0.000000e+00> : vector<2x16xf32>
    %79 = tpu.matmul %78, %73, %cst_68 {dimension_numbers = #tpu.dot_dimension_numbers<[1], [0], [0], [1], [0, 0, 1, 1], [], []>} : vector<2x32xf32>, vector<32x16xf32>, vector<2x16xf32> -> vector<2x16xf32>
    %80 = vector.broadcast %74 : vector<1x16xf32> to vector<2x16xf32>
    %81 = arith.addf %79, %80 : vector<2x16xf32>
    %cst_69 = arith.constant 0.000000e+00 : f32
    %82 = vector.broadcast %cst_69 : f32 to vector<2x16xf32>
    %83 = arith.maximumf %81, %82 : vector<2x16xf32>
    %84 = arith.addf %76, %77 : vector<2x16xf32>
    %cst_70 = arith.constant 5.000000e-01 : f32
    %85 = vector.broadcast %cst_70 : f32 to vector<2x16xf32>
    %86 = arith.mulf %85, %84 : vector<2x16xf32>
    %87 = arith.addf %83, %86 : vector<2x16xf32>
    %88 = tpu.concatenate %87, %17 in 1 : vector<2x16xf32>, vector<2x4xf32> -> vector<2x20xf32>
    %c0_71 = arith.constant 0 : index
    %c0_72 = arith.constant 0 : index
    %89 = vector.load %arg15[%c0_71, %c0_72] : memref<20x32xf32, #tpu.memory_space<vmem>>, vector<20x32xf32>
    %c0_73 = arith.constant 0 : index
    %c0_74 = arith.constant 0 : index
    %90 = vector.load %arg16[%c0_73, %c0_74] : memref<1x32xf32, #tpu.memory_space<vmem>>, vector<1x32xf32>
    %cst_75 = arith.constant dense<0.000000e+00> : vector<2x32xf32>
    %91 = tpu.matmul %88, %89, %cst_75 {dimension_numbers = #tpu.dot_dimension_numbers<[1], [0], [0], [1], [0, 0, 1, 1], [], []>} : vector<2x20xf32>, vector<20x32xf32>, vector<2x32xf32> -> vector<2x32xf32>
    %92 = vector.broadcast %90 : vector<1x32xf32> to vector<2x32xf32>
    %93 = arith.addf %91, %92 : vector<2x32xf32>
    %cst_76 = arith.constant 0.000000e+00 : f32
    %94 = vector.broadcast %cst_76 : f32 to vector<2x32xf32>
    %95 = arith.maximumf %93, %94 : vector<2x32xf32>
    %c0_77 = arith.constant 0 : index
    %c0_78 = arith.constant 0 : index
    %96 = vector.load %arg17[%c0_77, %c0_78] : memref<32x32xf32, #tpu.memory_space<vmem>>, vector<32x32xf32>
    %c0_79 = arith.constant 0 : index
    %c0_80 = arith.constant 0 : index
    %97 = vector.load %arg18[%c0_79, %c0_80] : memref<1x32xf32, #tpu.memory_space<vmem>>, vector<1x32xf32>
    %cst_81 = arith.constant dense<0.000000e+00> : vector<2x32xf32>
    %98 = tpu.matmul %95, %96, %cst_81 {dimension_numbers = #tpu.dot_dimension_numbers<[1], [0], [0], [1], [0, 0, 1, 1], [], []>} : vector<2x32xf32>, vector<32x32xf32>, vector<2x32xf32> -> vector<2x32xf32>
    %99 = vector.broadcast %97 : vector<1x32xf32> to vector<2x32xf32>
    %100 = arith.addf %98, %99 : vector<2x32xf32>
    %cst_82 = arith.constant 0.000000e+00 : f32
    %101 = vector.broadcast %cst_82 : f32 to vector<2x32xf32>
    %102 = arith.maximumf %100, %101 : vector<2x32xf32>
    %c0_83 = arith.constant 0 : index
    %c0_84 = arith.constant 0 : index
    %103 = vector.load %arg19[%c0_83, %c0_84] : memref<32x4xf32, #tpu.memory_space<vmem>>, vector<32x4xf32>
    %c0_85 = arith.constant 0 : index
    %c0_86 = arith.constant 0 : index
    %104 = vector.load %arg20[%c0_85, %c0_86] : memref<1x4xf32, #tpu.memory_space<vmem>>, vector<1x4xf32>
    %c0_87 = arith.constant 0 : index
    %c0_88 = arith.constant 0 : index
    %105 = vector.load %arg21[%c0_87, %c0_88] : memref<32x4xf32, #tpu.memory_space<vmem>>, vector<32x4xf32>
    %c0_89 = arith.constant 0 : index
    %c0_90 = arith.constant 0 : index
    %106 = vector.load %arg22[%c0_89, %c0_90] : memref<1x4xf32, #tpu.memory_space<vmem>>, vector<1x4xf32>
    %cst_91 = arith.constant dense<0.000000e+00> : vector<2x4xf32>
    %107 = tpu.matmul %102, %103, %cst_91 {dimension_numbers = #tpu.dot_dimension_numbers<[1], [0], [0], [1], [0, 0, 1, 1], [], []>} : vector<2x32xf32>, vector<32x4xf32>, vector<2x4xf32> -> vector<2x4xf32>
    %108 = vector.broadcast %104 : vector<1x4xf32> to vector<2x4xf32>
    %109 = arith.addf %107, %108 : vector<2x4xf32>
    %cst_92 = arith.constant dense<0.000000e+00> : vector<2x4xf32>
    %110 = tpu.matmul %102, %105, %cst_92 {dimension_numbers = #tpu.dot_dimension_numbers<[1], [0], [0], [1], [0, 0, 1, 1], [], []>} : vector<2x32xf32>, vector<32x4xf32>, vector<2x4xf32> -> vector<2x4xf32>
    %111 = vector.broadcast %106 : vector<1x4xf32> to vector<2x4xf32>
    %112 = arith.addf %110, %111 : vector<2x4xf32>
    %cst_93 = arith.constant -2.000000e+01 : f32
    %cst_94 = arith.constant 2.000000e+00 : f32
    %113 = vector.broadcast %cst_93 : f32 to vector<2x4xf32>
    %114 = arith.maximumf %113, %112 : vector<2x4xf32>
    %115 = vector.broadcast %cst_94 : f32 to vector<2x4xf32>
    %116 = arith.minimumf %115, %114 : vector<2x4xf32>
    %117 = math.exp %116 : vector<2x4xf32>
    %c0_95 = arith.constant 0 : index
    %c0_96 = arith.constant 0 : index
    %118 = vector.load %arg2[%c0_95, %c0_96] : memref<2x4xf32, #tpu.memory_space<vmem>>, vector<2x4xf32>
    %119 = arith.mulf %117, %118 : vector<2x4xf32>
    %120 = arith.addf %109, %119 : vector<2x4xf32>
    %121 = arith.subf %120, %109 : vector<2x4xf32>
    %122 = arith.divf %121, %117 : vector<2x4xf32>
    %cst_97 = arith.constant -5.000000e-01 : f32
    %123 = vector.broadcast %cst_97 : f32 to vector<2x4xf32>
    %124 = arith.mulf %123, %122 : vector<2x4xf32>
    %125 = arith.mulf %124, %122 : vector<2x4xf32>
    %126 = arith.subf %125, %116 : vector<2x4xf32>
    %cst_98 = arith.constant 0.918938517 : f32
    %127 = vector.broadcast %cst_98 : f32 to vector<2x4xf32>
    %128 = arith.subf %126, %127 : vector<2x4xf32>
    %cst_99 = arith.constant dense<0.000000e+00> : vector<2xf32>
    %129 = vector.multi_reduction <add>, %128, %cst_99 [1] : vector<2x4xf32> to vector<2xf32>
    %130 = vector.shape_cast %129 : vector<2xf32> to vector<2x1xf32>
    %cst_100 = arith.constant -2.000000e+00 : f32
    %131 = vector.broadcast %cst_100 : f32 to vector<2x4xf32>
    %132 = arith.mulf %131, %120 : vector<2x4xf32>
    %cst_101 = arith.constant 0.000000e+00 : f32
    %133 = vector.broadcast %cst_101 : f32 to vector<2x4xf32>
    %134 = arith.maximumf %132, %133 : vector<2x4xf32>
    %135 = math.absf %132 : vector<2x4xf32>
    %cst_102 = arith.constant 0.000000e+00 : f32
    %136 = vector.broadcast %cst_102 : f32 to vector<2x4xf32>
    %137 = arith.subf %136, %135 : vector<2x4xf32>
    %138 = math.exp %137 : vector<2x4xf32>
    %cst_103 = arith.constant 1.000000e+00 : f32
    %139 = vector.broadcast %cst_103 : f32 to vector<2x4xf32>
    %140 = arith.addf %139, %138 : vector<2x4xf32>
    %141 = math.log %140 : vector<2x4xf32>
    %142 = arith.addf %134, %141 : vector<2x4xf32>
    %cst_104 = arith.constant 0.693147182 : f32
    %143 = vector.broadcast %cst_104 : f32 to vector<2x4xf32>
    %144 = arith.subf %143, %120 : vector<2x4xf32>
    %145 = arith.subf %144, %142 : vector<2x4xf32>
    %cst_105 = arith.constant 2.000000e+00 : f32
    %146 = vector.broadcast %cst_105 : f32 to vector<2x4xf32>
    %147 = arith.mulf %146, %145 : vector<2x4xf32>
    %cst_106 = arith.constant dense<0.000000e+00> : vector<2xf32>
    %148 = vector.multi_reduction <add>, %147, %cst_106 [1] : vector<2x4xf32> to vector<2xf32>
    %149 = vector.shape_cast %148 : vector<2xf32> to vector<2x1xf32>
    %150 = arith.subf %130, %149 : vector<2x1xf32>
    %cst_107 = arith.constant 0.693147182 : f32
    %151 = vector.broadcast %cst_107 : f32 to vector<2x1xf32>
    %152 = arith.subf %150, %151 : vector<2x1xf32>
    %153 = math.tanh %120 : vector<2x4xf32>
    %cst_108 = arith.constant 1.000000e+00 : f32
    %154 = vector.broadcast %cst_108 : f32 to vector<2x4xf32>
    %155 = arith.addf %153, %154 : vector<2x4xf32>
    %cst_109 = arith.constant 5.000000e-01 : f32
    %156 = vector.broadcast %cst_109 : f32 to vector<2x4xf32>
    %157 = arith.mulf %156, %155 : vector<2x4xf32>
    %cst_110 = arith.constant 4.000000e+00 : f32
    %158 = vector.broadcast %cst_110 : f32 to vector<2x4xf32>
    %159 = arith.mulf %157, %158 : vector<2x4xf32>
    %cst_111 = arith.constant -2.000000e+00 : f32
    %160 = vector.broadcast %cst_111 : f32 to vector<2x4xf32>
    %161 = arith.addf %160, %159 : vector<2x4xf32>
    %c0_112 = arith.constant 0 : index
    %c0_113 = arith.constant 0 : index
    %162 = vector.load %arg23[%c0_112, %c0_113] : memref<2x4xf32, #tpu.memory_space<vmem>>, vector<2x4xf32>
    tpu.vector_store %arg23[%c0_112, %c0_113], %161 {strides = array<i32>} : memref<2x4xf32, #tpu.memory_space<vmem>>, vector<2x4xf32>,
    %c0_114 = arith.constant 0 : index
    %c0_115 = arith.constant 0 : index
    %163 = vector.load %arg24[%c0_114, %c0_115] : memref<2x1xf32, #tpu.memory_space<vmem>>, vector<2x1xf32>
    tpu.vector_store %arg24[%c0_114, %c0_115], %152 {strides = array<i32>} : memref<2x1xf32, #tpu.memory_space<vmem>>, vector<2x1xf32>,
    return
  }
}

</mosaic_0001>

<llo_original>
// kernel: tpu_custom_call.1
$region0: #{tpu_custom_call.1}
  #allocation0 [shape = 'u32[]', space=smem, size = 0x4, offset = 0x4, fixed_abs, tag = 'smem constant byte address 0x4 - core index']
  #allocation1 [shape = 'u32[144,128]{1,0:T(1,128)}', space=vmem, size = 0x12000, scoped, tag = 'internal scratch']
  #allocation2 [shape = 'f32[32,4]{1,0:T(8,128)}', space=vmem, size = 0x4000, scoped, tag = 'scratch operand']
  #allocation3 [shape = 'f32[16,8]{1,0:T(8,128)}', space=vmem, size = 0x2000, scoped, tag = 'scratch operand']
  #allocation4 [shape = 'f32[8,8]{1,0:T(8,128)}', space=vmem, size = 0x1000, scoped, tag = 'scratch operand']
  #allocation5 [shape = 'f32[4,16]{1,0:T(4,128)}', space=vmem, size = 0x800, scoped, tag = 'scratch operand']
  %s0 = inlined_call_operand.vmem [shape: f32[32,4], index: 0, kind: input, shape index: {}]
  %s1 = inlined_call_operand.vmem [shape: f32[2,4], index: 1, kind: input, shape index: {}]
  %s2 = inlined_call_operand.vmem [shape: f32[2,4], index: 2, kind: input, shape index: {}]
  %s3 = inlined_call_operand.vmem [shape: f32[8,8], index: 3, kind: input, shape index: {}]
  %s4 = inlined_call_operand.vmem [shape: f32[1,8], index: 4, kind: input, shape index: {}]
  %s5 = inlined_call_operand.vmem [shape: f32[4,8], index: 5, kind: input, shape index: {}]
  %s6 = inlined_call_operand.vmem [shape: f32[1,8], index: 6, kind: input, shape index: {}]
  %s7 = inlined_call_operand.vmem [shape: f32[16,8], index: 7, kind: input, shape index: {}]
  %s8 = inlined_call_operand.vmem [shape: f32[1,8], index: 8, kind: input, shape index: {}]
  %s9 = inlined_call_operand.vmem [shape: f32[16,16], index: 9, kind: input, shape index: {}]
  %s10 = inlined_call_operand.vmem [shape: f32[1,16], index: 10, kind: input, shape index: {}]
  %s11 = inlined_call_operand.vmem [shape: f32[8,16], index: 11, kind: input, shape index: {}]
  %s12 = inlined_call_operand.vmem [shape: f32[1,16], index: 12, kind: input, shape index: {}]
  %s13 = inlined_call_operand.vmem [shape: f32[32,16], index: 13, kind: input, shape index: {}]
  %s14 = inlined_call_operand.vmem [shape: f32[1,16], index: 14, kind: input, shape index: {}]
  %s15 = inlined_call_operand.vmem [shape: f32[20,32], index: 15, kind: input, shape index: {}]
  %s16 = inlined_call_operand.vmem [shape: f32[1,32], index: 16, kind: input, shape index: {}]
  %s17 = inlined_call_operand.vmem [shape: f32[32,32], index: 17, kind: input, shape index: {}]
  %s18 = inlined_call_operand.vmem [shape: f32[1,32], index: 18, kind: input, shape index: {}]
  %s19 = inlined_call_operand.vmem [shape: f32[32,4], index: 19, kind: input, shape index: {}]
  %s20 = inlined_call_operand.vmem [shape: f32[1,4], index: 20, kind: input, shape index: {}]
  %s21 = inlined_call_operand.vmem [shape: f32[32,4], index: 21, kind: input, shape index: {}]
  %s22 = inlined_call_operand.vmem [shape: f32[1,4], index: 22, kind: input, shape index: {}]
  %s23 = inlined_call_operand.hbm [shape: f32[2,4], index: 23, kind: output, shape index: {0}]
  %s24 = inlined_call_operand.vmem [shape: f32[2,1], index: 24, kind: output, shape index: {1}]
  %25 = xla_tuple %s23, %s24
  %s26 = sld [smem:[#allocation0]]
  $region110: #{tpu_custom_call.1} parent=0
    _
  %s28 = ssub.s32 1, %s26
  %s29 = scalar_select 0, %s28, %s26
  $region1: #{tpu_custom_call.1} parent=0
    #allocation6 [shape = 'u8[1024]{0}', space=vmem, size = 0x400, scoped, tag = 'output window, operand 0, single buffered']
    #allocation7 [shape = 's32[1]{0}', space=sflag, size = 0x4, scoped, tag = 'scoped memory for tpu_custom_call.1']
    %30 = vsyncpa [#allocation7], 0
    // Predicated region
    $region2: #{tpu_custom_call.1} parent=1 // pred_check
      _
    $region3: #{tpu_custom_call.1} parent=1 // pred_check_branch
      %32 = sbr.rel (0) target = $region5
    $region4: #{tpu_custom_call.1} parent=1 // pred_region
      _
    $region5: #{tpu_custom_call.1} parent=1 // pred_fallthru
      _
    // Predicated region
    $region6: #{tpu_custom_call.1} parent=1 // pred_check
      _
    $region7: #{tpu_custom_call.1} parent=1 // pred_check_branch
      %34 = sbr.rel (0) target = $region9
    $region8: #{tpu_custom_call.1} parent=1 // pred_region
      _
    $region9: #{tpu_custom_call.1} parent=1 // pred_fallthru
      _
    // Predicated region
    $region10: #{tpu_custom_call.1} parent=1 // pred_check
      _
    $region11: #{tpu_custom_call.1} parent=1 // pred_check_branch
      %36 = sbr.rel (0) target = $region13
    $region12: #{tpu_custom_call.1} parent=1 // pred_region
      _
    $region13: #{tpu_custom_call.1} parent=1 // pred_fallthru
      _
    // Predicated region
    $region14: #{tpu_custom_call.1} parent=1 // pred_check
      _
    $region15: #{tpu_custom_call.1} parent=1 // pred_check_branch
      %38 = sbr.rel (0) target = $region17
    $region16: #{tpu_custom_call.1} parent=1 // pred_region
      _
    $region17: #{tpu_custom_call.1} parent=1 // pred_fallthru
      _
    // Predicated region
    $region18: #{tpu_custom_call.1} parent=1 // pred_check
      _
    $region19: #{tpu_custom_call.1} parent=1 // pred_check_branch
      %40 = sbr.rel (0) target = $region21
    $region20: #{tpu_custom_call.1} parent=1 // pred_region
      _
    $region21: #{tpu_custom_call.1} parent=1 // pred_fallthru
      _
    // Predicated region
    $region22: #{tpu_custom_call.1} parent=1 // pred_check
      _
    $region23: #{tpu_custom_call.1} parent=1 // pred_check_branch
      %42 = sbr.rel (0) target = $region25
    $region24: #{tpu_custom_call.1} parent=1 // pred_region
      _
    $region25: #{tpu_custom_call.1} parent=1 // pred_fallthru
      _
    // Predicated region
    $region26: #{tpu_custom_call.1} parent=1 // pred_check
      _
    $region27: #{tpu_custom_call.1} parent=1 // pred_check_branch
      %44 = sbr.rel (0) target = $region29
    $region28: #{tpu_custom_call.1} parent=1 // pred_region
      _
    $region29: #{tpu_custom_call.1} parent=1 // pred_fallthru
      _
    // Predicated region
    $region30: #{tpu_custom_call.1} parent=1 // pred_check
      _
    $region31: #{tpu_custom_call.1} parent=1 // pred_check_branch
      %46 = sbr.rel (0) target = $region33
    $region32: #{tpu_custom_call.1} parent=1 // pred_region
      _
    $region33: #{tpu_custom_call.1} parent=1 // pred_fallthru
      _
    // Predicated region
    $region34: #{tpu_custom_call.1} parent=1 // pred_check
      _
    $region35: #{tpu_custom_call.1} parent=1 // pred_check_branch
      %48 = sbr.rel (0) target = $region37
    $region36: #{tpu_custom_call.1} parent=1 // pred_region
      _
    $region37: #{tpu_custom_call.1} parent=1 // pred_fallthru
      _
    // Predicated region
    $region38: #{tpu_custom_call.1} parent=1 // pred_check
      _
    $region39: #{tpu_custom_call.1} parent=1 // pred_check_branch
      %50 = sbr.rel (0) target = $region41
    $region40: #{tpu_custom_call.1} parent=1 // pred_region
      _
    $region41: #{tpu_custom_call.1} parent=1 // pred_fallthru
      _
    // Predicated region
    $region42: #{tpu_custom_call.1} parent=1 // pred_check
      _
    $region43: #{tpu_custom_call.1} parent=1 // pred_check_branch
      %52 = sbr.rel (0) target = $region45
    $region44: #{tpu_custom_call.1} parent=1 // pred_region
      _
    $region45: #{tpu_custom_call.1} parent=1 // pred_fallthru
      _
    // Predicated region
    $region46: #{tpu_custom_call.1} parent=1 // pred_check
      _
    $region47: #{tpu_custom_call.1} parent=1 // pred_check_branch
      %54 = sbr.rel (0) target = $region49
    $region48: #{tpu_custom_call.1} parent=1 // pred_region
      _
    $region49: #{tpu_custom_call.1} parent=1 // pred_fallthru
      _
    // Predicated region
    $region50: #{tpu_custom_call.1} parent=1 // pred_check
      _
    $region51: #{tpu_custom_call.1} parent=1 // pred_check_branch
      %56 = sbr.rel (0) target = $region53
    $region52: #{tpu_custom_call.1} parent=1 // pred_region
      _
    $region53: #{tpu_custom_call.1} parent=1 // pred_fallthru
      _
    // Predicated region
    $region54: #{tpu_custom_call.1} parent=1 // pred_check
      _
    $region55: #{tpu_custom_call.1} parent=1 // pred_check_branch
      %58 = sbr.rel (0) target = $region57
    $region56: #{tpu_custom_call.1} parent=1 // pred_region
      _
    $region57: #{tpu_custom_call.1} parent=1 // pred_fallthru
      _
    // Predicated region
    $region58: #{tpu_custom_call.1} parent=1 // pred_check
      _
    $region59: #{tpu_custom_call.1} parent=1 // pred_check_branch
      %60 = sbr.rel (0) target = $region61
    $region60: #{tpu_custom_call.1} parent=1 // pred_region
      _
    $region61: #{tpu_custom_call.1} parent=1 // pred_fallthru
      _
    // Predicated region
    $region62: #{tpu_custom_call.1} parent=1 // pred_check
      _
    $region63: #{tpu_custom_call.1} parent=1 // pred_check_branch
      %62 = sbr.rel (0) target = $region65
    $region64: #{tpu_custom_call.1} parent=1 // pred_region
      _
    $region65: #{tpu_custom_call.1} parent=1 // pred_fallthru
      _
    // Predicated region
    $region66: #{tpu_custom_call.1} parent=1 // pred_check
      _
    $region67: #{tpu_custom_call.1} parent=1 // pred_check_branch
      %64 = sbr.rel (0) target = $region69
    $region68: #{tpu_custom_call.1} parent=1 // pred_region
      _
    $region69: #{tpu_custom_call.1} parent=1 // pred_fallthru
      _
    // Predicated region
    $region70: #{tpu_custom_call.1} parent=1 // pred_check
      _
    $region71: #{tpu_custom_call.1} parent=1 // pred_check_branch
      %66 = sbr.rel (0) target = $region73
    $region72: #{tpu_custom_call.1} parent=1 // pred_region
      _
    $region73: #{tpu_custom_call.1} parent=1 // pred_fallthru
      _
    // Predicated region
    $region74: #{tpu_custom_call.1} parent=1 // pred_check
      _
    $region75: #{tpu_custom_call.1} parent=1 // pred_check_branch
      %68 = sbr.rel (0) target = $region77
    $region76: #{tpu_custom_call.1} parent=1 // pred_region
      _
    $region77: #{tpu_custom_call.1} parent=1 // pred_fallthru
      _
    // Predicated region
    $region78: #{tpu_custom_call.1} parent=1 // pred_check
      _
    $region79: #{tpu_custom_call.1} parent=1 // pred_check_branch
      %70 = sbr.rel (0) target = $region81
    $region80: #{tpu_custom_call.1} parent=1 // pred_region
      _
    $region81: #{tpu_custom_call.1} parent=1 // pred_fallthru
      _
    // Predicated region
    $region82: #{tpu_custom_call.1} parent=1 // pred_check
      _
    $region83: #{tpu_custom_call.1} parent=1 // pred_check_branch
      %72 = sbr.rel (0) target = $region85
    $region84: #{tpu_custom_call.1} parent=1 // pred_region
      _
    $region85: #{tpu_custom_call.1} parent=1 // pred_fallthru
      _
    // Predicated region
    $region86: #{tpu_custom_call.1} parent=1 // pred_check
      _
    $region87: #{tpu_custom_call.1} parent=1 // pred_check_branch
      %74 = sbr.rel (0) target = $region89
    $region88: #{tpu_custom_call.1} parent=1 // pred_region
      _
    $region89: #{tpu_custom_call.1} parent=1 // pred_fallthru
      _
    // Predicated region
    $region90: #{tpu_custom_call.1} parent=1 // pred_check
      _
    $region91: #{tpu_custom_call.1} parent=1 // pred_check_branch
      %76 = sbr.rel (0) target = $region93
    $region92: #{tpu_custom_call.1} parent=1 // pred_region
      _
    $region93: #{tpu_custom_call.1} parent=1 // pred_fallthru
      _
    %v77 = vld [vmem:[%s0] sm:$0xff]
    %v78 = vld [vmem:[%s0 + $0x8] sm:$0xff]
    %v79 = vld [vmem:[%s0 + $0x10] sm:$0xff]
    %v80 = vld [vmem:[%s0 + $0x18] sm:$0xff]
    %v81 = vsub.f32 %v77, -2.0
    %v82 = vsub.f32 %v78, -2.0
    %v83 = vsub.f32 %v79, -2.0
    %v84 = vsub.f32 %v80, -2.0
    %v85 = vrcp.pop 4.0
    %v86 = vmul.f32 %v81, %v85
    %v87 = vmul.f32 %v82, %v85
    %v88 = vmul.f32 %v83, %v85
    %v89 = vmul.f32 %v84, %v85
    %v90 = vsub.f32 %v86, 0.5
    %v91 = vsub.f32 %v87, 0.5
    %v92 = vsub.f32 %v88, 0.5
    %v93 = vsub.f32 %v89, 0.5
    %v94 = vmul.f32 %v90, 3.46
    %v95 = vmul.f32 %v91, 3.46
    %v96 = vmul.f32 %v92, 3.46
    %v97 = vmul.f32 %v93, 3.46
    %v98 = vld [vmem:[%s1] sm:$0x3]
    %v99 = vsub.f32 %v98, -2.0
    %v100 = vmul.f32 %v99, %v85
    %v101 = vsub.f32 %v100, 0.5
    %v102 = vmul.f32 %v101, 3.46
    %v103 = vld [vmem:[%s3] sm:$0xff]
    %v104 = vld [vmem:[%s4] sm:$0x1]
    %v105 = vld [vmem:[%s5] sm:$0xf]
    %v106 = vld [vmem:[%s6] sm:$0x1]
    %vm107 = vcmask 31744
    %108 = vst.msk [vmem:[#allocation2] sm:$0xff] %vm107, %v94
    %109 = vst.msk [vmem:[#allocation2 + $0x8] sm:$0xff] %vm107, %v95
    %110 = vst.msk [vmem:[#allocation2 + $0x10] sm:$0xff] %vm107, %v96
    %111 = vst.msk [vmem:[#allocation2 + $0x18] sm:$0xff] %vm107, %v97
    %v112 = vld [vmem:[#allocation2] ss:$2 sm:$0xff]
    %s113 = scalar_lea.vmem [#allocation2], 16
    %v114 = vld [vmem:[%s113] ss:$2 sm:$0xff]
    %s115 = scalar_lea.vmem [#allocation2], 1
    %v116 = vld [vmem:[%s115] ss:$2 sm:$0xff]
    %s117 = scalar_lea.vmem [#allocation2], 17
    %v118 = vld [vmem:[%s117] ss:$2 sm:$0xff]
    %121 = vrot.lane.b32.xlu0 %v116, 4
    %v122 = vpop.permute.xlu0 %121
    %123 = vrot.lane.b32.xlu0 %v118, 4
    %v124 = vpop.permute.xlu0 %123
    %v127 = vsel %vm107, %v112, %v122
    %v128 = vsel %vm107, %v114, %v124
    %v130 = vlaneseq
    %v131 = vshrl.u32 %v130, 7
    %v132 = vsub.s32 0, %v131
    %v133 = vrot.slane %v104, %v132
    %vm135 = vcmask 64512
    %v137 = vsel %vm135, %v127, 0
    %v140 = vsel %vm135, %v128, 0
    %142 = vmatprep.subr.mxu0 0.0
    %143 = vmatpush1.msra.mxu0 %v103
    %144 = vmatprep.subr.mxu0 0.0
    %145 = vmatpush1.msra.mxu0 0.0
    %146 = vmatprep.subr.mxu0 0.0
    %147 = vmatpush1.msra.mxu0 0.0
    %148 = vmatprep.subr.mxu0 0.0
    %149 = vmatpush1.msra.mxu0 0.0
    %150 = vmatprep.subr.mxu0 0.0
    %151 = vmatpush1.msra.mxu0 0.0
    %152 = vmatprep.subr.mxu0 0.0
    %153 = vmatpush1.msra.mxu0 0.0
    %154 = vmatprep.subr.mxu0 0.0
    %155 = vmatpush1.msra.mxu0 0.0
    %156 = vmatprep.subr.mxu0 0.0
    %157 = vmatpush1.msra.mxu0 0.0
    %158 = vmatprep.subr.mxu0 0.0
    %159 = vmatpush1.msra.mxu0 0.0
    %160 = vmatprep.subr.mxu0 0.0
    %161 = vmatpush1.msra.mxu0 0.0
    %162 = vmatprep.subr.mxu0 0.0
    %163 = vmatpush1.msra.mxu0 0.0
    %164 = vmatprep.subr.mxu0 0.0
    %165 = vmatpush1.msra.mxu0 0.0
    %166 = vmatprep.subr.mxu0 0.0
    %167 = vmatpush1.msra.mxu0 0.0
    %168 = vmatprep.subr.mxu0 0.0
    %169 = vmatpush1.msra.mxu0 0.0
    %170 = vmatprep.subr.mxu0 0.0
    %171 = vmatpush1.msra.mxu0 0.0
    %172 = vmatprep.subr.mxu0 0.0
    %173 = vmatpush1.msra.mxu0 0.0
    %174 = vmatprep.subr.mxu0 0.0
    %175 = vmatpush1.msra.mxu0 0.0
    %176 = vmatprep.subr.mxu0 0.0
    %177 = vmatpush1.msra.mxu0 0.0
    %178 = vmatprep.subr.mxu0 0.0
    %179 = vmatpush1.msra.mxu0 0.0
    %180 = vmatprep.subr.mxu0 0.0
    %181 = vmatpush1.msra.mxu0 0.0
    %182 = vmatprep.subr.mxu0 0.0
    %183 = vmatpush1.msra.mxu0 0.0
    %184 = vmatprep.subr.mxu0 0.0
    %185 = vmatpush1.msra.mxu0 0.0
    %186 = vmatprep.subr.mxu0 0.0
    %187 = vmatpush1.msra.mxu0 0.0
    %188 = vmatprep.subr.mxu0 0.0
    %189 = vmatpush1.msra.mxu0 0.0
    %190 = vmatprep.subr.mxu0 0.0
    %191 = vmatpush1.msra.mxu0 0.0
    %192 = vmatprep.subr.mxu0 0.0
    %193 = vmatpush1.msra.mxu0 0.0
    %194 = vmatprep.subr.mxu0 0.0
    %195 = vmatpush1.msra.mxu0 0.0
    %196 = vmatprep.subr.mxu0 0.0
    %197 = vmatpush1.msra.mxu0 0.0
    %198 = vmatprep.subr.mxu0 0.0
    %199 = vmatpush1.msra.mxu0 0.0
    %200 = vmatprep.subr.mxu0 0.0
    %201 = vmatpush1.msra.mxu0 0.0
    %202 = vmatprep.subr.mxu0 0.0
    %203 = vmatpush1.msra.mxu0 0.0
    %204 = vmatprep.subr.mxu0 0.0
    %205 = vmatpush1.msra.mxu0 0.0
    %206 = vmatprep.mubr.f32.mxu0 0.0
    %207 = vmatmul.mubr.f32.gmra.mrb[0].mxu0 %v137
    %v208 = vpop.f32.mrb[0].mxu0
    %v209 = vadd.f32 %v133, %v208
    %v210 = vpop.f32.mrb[0].mxu0
    %211 = vmatprep.mubr.f32.mxu0 0.0
    %212 = vmatmul.mubr.f32.gmra.mrb[0].mxu0 %v140
    %v213 = vpop.f32.mrb[0].mxu0
    %v214 = vadd.f32 %v133, %v213
    %v215 = vpop.f32.mrb[0].mxu0
    %216 = vdwg.mxu0
    %v217 = vmax.f32 %v209, 0.0
    %v218 = vmax.f32 %v214, 0.0
    %v219 = vadd.f32 %v112, %v116
    %v220 = vadd.f32 %v114, %v118
    %v221 = vmul.f32 %v219, 0.5
    %v222 = vmul.f32 %v220, 0.5
    %v224 = vlaneseq
    %v225 = vshrl.u32 %v224, 7
    %v226 = vsub.s32 0, %v225
    %v227 = vrot.slane %v106, %v226
    %v230 = vsel %vm107, %v221, 0
    %v233 = vsel %vm107, %v222, 0
    %vm235 = vcmask 1043456
    %v237 = vsel %vm235, %v105, 0
    %239 = vmatprep.subr.mxu0 0.0
    %240 = vmatpush1.msra.mxu0 %v237
    %241 = vmatprep.subr.mxu0 0.0
    %242 = vmatpush1.msra.mxu0 0.0
    %243 = vmatprep.subr.mxu0 0.0
    %244 = vmatpush1.msra.mxu0 0.0
    %245 = vmatprep.subr.mxu0 0.0
    %246 = vmatpush1.msra.mxu0 0.0
    %247 = vmatprep.subr.mxu0 0.0
    %248 = vmatpush1.msra.mxu0 0.0
    %249 = vmatprep.subr.mxu0 0.0
    %250 = vmatpush1.msra.mxu0 0.0
    %251 = vmatprep.subr.mxu0 0.0
    %252 = vmatpush1.msra.mxu0 0.0
    %253 = vmatprep.subr.mxu0 0.0
    %254 = vmatpush1.msra.mxu0 0.0
    %255 = vmatprep.subr.mxu0 0.0
    %256 = vmatpush1.msra.mxu0 0.0
    %257 = vmatprep.subr.mxu0 0.0
    %258 = vmatpush1.msra.mxu0 0.0
    %259 = vmatprep.subr.mxu0 0.0
    %260 = vmatpush1.msra.mxu0 0.0
    %261 = vmatprep.subr.mxu0 0.0
    %262 = vmatpush1.msra.mxu0 0.0
    %263 = vmatprep.subr.mxu0 0.0
    %264 = vmatpush1.msra.mxu0 0.0
    %265 = vmatprep.subr.mxu0 0.0
    %266 = vmatpush1.msra.mxu0 0.0
    %267 = vmatprep.subr.mxu0 0.0
    %268 = vmatpush1.msra.mxu0 0.0
    %269 = vmatprep.subr.mxu0 0.0
    %270 = vmatpush1.msra.mxu0 0.0
    %271 = vmatprep.subr.mxu0 0.0
    %272 = vmatpush1.msra.mxu0 0.0
    %273 = vmatprep.subr.mxu0 0.0
    %274 = vmatpush1.msra.mxu0 0.0
    %275 = vmatprep.subr.mxu0 0.0
    %276 = vmatpush1.msra.mxu0 0.0
    %277 = vmatprep.subr.mxu0 0.0
    %278 = vmatpush1.msra.mxu0 0.0
    %279 = vmatprep.subr.mxu0 0.0
    %280 = vmatpush1.msra.mxu0 0.0
    %281 = vmatprep.subr.mxu0 0.0
    %282 = vmatpush1.msra.mxu0 0.0
    %283 = vmatprep.subr.mxu0 0.0
    %284 = vmatpush1.msra.mxu0 0.0
    %285 = vmatprep.subr.mxu0 0.0
    %286 = vmatpush1.msra.mxu0 0.0
    %287 = vmatprep.subr.mxu0 0.0
    %288 = vmatpush1.msra.mxu0 0.0
    %289 = vmatprep.subr.mxu0 0.0
    %290 = vmatpush1.msra.mxu0 0.0
    %291 = vmatprep.subr.mxu0 0.0
    %292 = vmatpush1.msra.mxu0 0.0
    %293 = vmatprep.subr.mxu0 0.0
    %294 = vmatpush1.msra.mxu0 0.0
    %295 = vmatprep.subr.mxu0 0.0
    %296 = vmatpush1.msra.mxu0 0.0
    %297 = vmatprep.subr.mxu0 0.0
    %298 = vmatpush1.msra.mxu0 0.0
    %299 = vmatprep.subr.mxu0 0.0
    %300 = vmatpush1.msra.mxu0 0.0
    %301 = vmatprep.subr.mxu0 0.0
    %302 = vmatpush1.msra.mxu0 0.0
    %303 = vmatprep.mubr.f32.mxu0 0.0
    %304 = vmatmul.mubr.f32.gmra.mrb[0].mxu0 %v230
    %v305 = vpop.f32.mrb[0].mxu0
    %v306 = vadd.f32 %v227, %v305
    %v307 = vpop.f32.mrb[0].mxu0
    %308 = vmatprep.mubr.f32.mxu0 0.0
    %309 = vmatmul.mubr.f32.gmra.mrb[0].mxu0 %v233
    %v310 = vpop.f32.mrb[0].mxu0
    %v311 = vadd.f32 %v227, %v310
    %v312 = vpop.f32.mrb[0].mxu0
    %313 = vdwg.mxu0
    %v314 = vadd.f32 %v217, %v306
    %v315 = vadd.f32 %v218, %v311
    %v316 = vld [vmem:[%s7] sm:$0xff]
    %v317 = vld [vmem:[%s7 + $0x8] sm:$0xff]
    %v318 = vld [vmem:[%s8] sm:$0x1]
    %319 = vst.msk [vmem:[#allocation3] sm:$0xff] %vm135, %v314
    %320 = vst.msk [vmem:[#allocation3 + $0x8] sm:$0xff] %vm135, %v315
    %v321 = vld [vmem:[#allocation3] ss:$2 sm:$0xff]
    %s322 = scalar_lea.vmem [#allocation3], 1
    %v323 = vld [vmem:[%s322] ss:$2 sm:$0xff]
    %325 = vrot.lane.b32.xlu0 %v323, 8
    %v326 = vpop.permute.xlu0 %325
    %v328 = vsel %vm135, %v321, %v326
    %v330 = vlaneseq
    %v331 = vshrl.u32 %v330, 7
    %v332 = vsub.s32 0, %v331
    %v333 = vrot.slane %v318, %v332
    %vm335 = vcmask 130048
    %v337 = vsel %vm335, %v328, 0
    %339 = vmatprep.subr.mxu0 0.0
    %340 = vmatpush1.msra.mxu0 %v316
    %341 = vmatprep.subr.mxu0 0.0
    %342 = vmatpush1.msra.mxu0 %v317
    %343 = vmatprep.subr.mxu0 0.0
    %344 = vmatpush1.msra.mxu0 0.0
    %345 = vmatprep.subr.mxu0 0.0
    %346 = vmatpush1.msra.mxu0 0.0
    %347 = vmatprep.subr.mxu0 0.0
    %348 = vmatpush1.msra.mxu0 0.0
    %349 = vmatprep.subr.mxu0 0.0
    %350 = vmatpush1.msra.mxu0 0.0
    %351 = vmatprep.subr.mxu0 0.0
    %352 = vmatpush1.msra.mxu0 0.0
    %353 = vmatprep.subr.mxu0 0.0
    %354 = vmatpush1.msra.mxu0 0.0
    %355 = vmatprep.subr.mxu0 0.0
    %356 = vmatpush1.msra.mxu0 0.0
    %357 = vmatprep.subr.mxu0 0.0
    %358 = vmatpush1.msra.mxu0 0.0
    %359 = vmatprep.subr.mxu0 0.0
    %360 = vmatpush1.msra.mxu0 0.0
    %361 = vmatprep.subr.mxu0 0.0
    %362 = vmatpush1.msra.mxu0 0.0
    %363 = vmatprep.subr.mxu0 0.0
    %364 = vmatpush1.msra.mxu0 0.0
    %365 = vmatprep.subr.mxu0 0.0
    %366 = vmatpush1.msra.mxu0 0.0
    %367 = vmatprep.subr.mxu0 0.0
    %368 = vmatpush1.msra.mxu0 0.0
    %369 = vmatprep.subr.mxu0 0.0
    %370 = vmatpush1.msra.mxu0 0.0
    %371 = vmatprep.subr.mxu0 0.0
    %372 = vmatpush1.msra.mxu0 0.0
    %373 = vmatprep.subr.mxu0 0.0
    %374 = vmatpush1.msra.mxu0 0.0
    %375 = vmatprep.subr.mxu0 0.0
    %376 = vmatpush1.msra.mxu0 0.0
    %377 = vmatprep.subr.mxu0 0.0
    %378 = vmatpush1.msra.mxu0 0.0
    %379 = vmatprep.subr.mxu0 0.0
    %380 = vmatpush1.msra.mxu0 0.0
    %381 = vmatprep.subr.mxu0 0.0
    %382 = vmatpush1.msra.mxu0 0.0
    %383 = vmatprep.subr.mxu0 0.0
    %384 = vmatpush1.msra.mxu0 0.0
    %385 = vmatprep.subr.mxu0 0.0
    %386 = vmatpush1.msra.mxu0 0.0
    %387 = vmatprep.subr.mxu0 0.0
    %388 = vmatpush1.msra.mxu0 0.0
    %389 = vmatprep.subr.mxu0 0.0
    %390 = vmatpush1.msra.mxu0 0.0
    %391 = vmatprep.subr.mxu0 0.0
    %392 = vmatpush1.msra.mxu0 0.0
    %393 = vmatprep.subr.mxu0 0.0
    %394 = vmatpush1.msra.mxu0 0.0
    %395 = vmatprep.subr.mxu0 0.0
    %396 = vmatpush1.msra.mxu0 0.0
    %397 = vmatprep.subr.mxu0 0.0
    %398 = vmatpush1.msra.mxu0 0.0
    %399 = vmatprep.subr.mxu0 0.0
    %400 = vmatpush1.msra.mxu0 0.0
    %401 = vmatprep.subr.mxu0 0.0
    %402 = vmatpush1.msra.mxu0 0.0
    %403 = vmatprep.mubr.f32.mxu0 0.0
    %404 = vmatmul.mubr.f32.gmra.mrb[0].mxu0 %v337
    %v405 = vpop.f32.mrb[0].mxu0
    %v406 = vadd.f32 %v333, %v405
    %v407 = vpop.f32.mrb[0].mxu0
    %408 = vdwg.mxu0
    %v409 = vmax.f32 %v406, 0.0
    %v410 = vadd.f32 %v321, %v323
    %v411 = vmul.f32 %v410, 0.5
    %v412 = vadd.f32 %v409, %v411
    %v413 = vld [vmem:[%s9] sm:$0xff]
    %v414 = vld [vmem:[%s9 + $0x8] sm:$0xff]
    %v415 = vld [vmem:[%s10] sm:$0x1]
    %v416 = vld [vmem:[%s11] sm:$0xff]
    %v417 = vld [vmem:[%s12] sm:$0x1]
    %418 = vst.msk [vmem:[#allocation4] sm:$0xff] %vm135, %v412
    %v419 = vld [vmem:[#allocation4] ss:$2 sm:$0xf]
    %s420 = scalar_lea.vmem [#allocation4], 1
    %v421 = vld [vmem:[%s420] ss:$2 sm:$0xf]
    %423 = vrot.lane.b32.xlu0 %v421, 8
    %v424 = vpop.permute.xlu0 %423
    %v426 = vsel %vm135, %v419, %v424
    %v428 = vlaneseq
    %v429 = vshrl.u32 %v428, 7
    %v430 = vsub.s32 0, %v429
    %v431 = vrot.slane %v415, %v430
    %v434 = vsel %vm335, %v426, 0
    %436 = vmatprep.subr.mxu0 0.0
    %437 = vmatpush1.msra.mxu0 %v413
    %438 = vmatprep.subr.mxu0 0.0
    %439 = vmatpush1.msra.mxu0 %v414
    %440 = vmatprep.subr.mxu0 0.0
    %441 = vmatpush1.msra.mxu0 0.0
    %442 = vmatprep.subr.mxu0 0.0
    %443 = vmatpush1.msra.mxu0 0.0
    %444 = vmatprep.subr.mxu0 0.0
    %445 = vmatpush1.msra.mxu0 0.0
    %446 = vmatprep.subr.mxu0 0.0
    %447 = vmatpush1.msra.mxu0 0.0
    %448 = vmatprep.subr.mxu0 0.0
    %449 = vmatpush1.msra.mxu0 0.0
    %450 = vmatprep.subr.mxu0 0.0
    %451 = vmatpush1.msra.mxu0 0.0
    %452 = vmatprep.subr.mxu0 0.0
    %453 = vmatpush1.msra.mxu0 0.0
    %454 = vmatprep.subr.mxu0 0.0
    %455 = vmatpush1.msra.mxu0 0.0
    %456 = vmatprep.subr.mxu0 0.0
    %457 = vmatpush1.msra.mxu0 0.0
    %458 = vmatprep.subr.mxu0 0.0
    %459 = vmatpush1.msra.mxu0 0.0
    %460 = vmatprep.subr.mxu0 0.0
    %461 = vmatpush1.msra.mxu0 0.0
    %462 = vmatprep.subr.mxu0 0.0
    %463 = vmatpush1.msra.mxu0 0.0
    %464 = vmatprep.subr.mxu0 0.0
    %465 = vmatpush1.msra.mxu0 0.0
    %466 = vmatprep.subr.mxu0 0.0
    %467 = vmatpush1.msra.mxu0 0.0
    %468 = vmatprep.subr.mxu0 0.0
    %469 = vmatpush1.msra.mxu0 0.0
    %470 = vmatprep.subr.mxu0 0.0
    %471 = vmatpush1.msra.mxu0 0.0
    %472 = vmatprep.subr.mxu0 0.0
    %473 = vmatpush1.msra.mxu0 0.0
    %474 = vmatprep.subr.mxu0 0.0
    %475 = vmatpush1.msra.mxu0 0.0
    %476 = vmatprep.subr.mxu0 0.0
    %477 = vmatpush1.msra.mxu0 0.0
    %478 = vmatprep.subr.mxu0 0.0
    %479 = vmatpush1.msra.mxu0 0.0
    %480 = vmatprep.subr.mxu0 0.0
    %481 = vmatpush1.msra.mxu0 0.0
    %482 = vmatprep.subr.mxu0 0.0
    %483 = vmatpush1.msra.mxu0 0.0
    %484 = vmatprep.subr.mxu0 0.0
    %485 = vmatpush1.msra.mxu0 0.0
    %486 = vmatprep.subr.mxu0 0.0
    %487 = vmatpush1.msra.mxu0 0.0
    %488 = vmatprep.subr.mxu0 0.0
    %489 = vmatpush1.msra.mxu0 0.0
    %490 = vmatprep.subr.mxu0 0.0
    %491 = vmatpush1.msra.mxu0 0.0
    %492 = vmatprep.subr.mxu0 0.0
    %493 = vmatpush1.msra.mxu0 0.0
    %494 = vmatprep.subr.mxu0 0.0
    %495 = vmatpush1.msra.mxu0 0.0
    %496 = vmatprep.subr.mxu0 0.0
    %497 = vmatpush1.msra.mxu0 0.0
    %498 = vmatprep.subr.mxu0 0.0
    %499 = vmatpush1.msra.mxu0 0.0
    %500 = vmatprep.mubr.f32.mxu0 0.0
    %501 = vmatmul.mubr.f32.gmra.mrb[0].mxu0 %v434
    %v502 = vpop.f32.mrb[0].mxu0
    %v503 = vadd.f32 %v431, %v502
    %v504 = vpop.f32.mrb[0].mxu0
    %505 = vdwg.mxu0
    %v506 = vmax.f32 %v503, 0.0
    %v507 = vadd.f32 %v419, %v421
    %v508 = vmul.f32 %v507, 0.5
    %v510 = vlaneseq
    %v511 = vshrl.u32 %v510, 7
    %v512 = vsub.s32 0, %v511
    %v513 = vrot.slane %v417, %v512
    %v516 = vsel %vm135, %v508, 0
    %518 = vmatprep.subr.mxu0 0.0
    %519 = vmatpush1.msra.mxu0 %v416
    %520 = vmatprep.subr.mxu0 0.0
    %521 = vmatpush1.msra.mxu0 0.0
    %522 = vmatprep.subr.mxu0 0.0
    %523 = vmatpush1.msra.mxu0 0.0
    %524 = vmatprep.subr.mxu0 0.0
    %525 = vmatpush1.msra.mxu0 0.0
    %526 = vmatprep.subr.mxu0 0.0
    %527 = vmatpush1.msra.mxu0 0.0
    %528 = vmatprep.subr.mxu0 0.0
    %529 = vmatpush1.msra.mxu0 0.0
    %530 = vmatprep.subr.mxu0 0.0
    %531 = vmatpush1.msra.mxu0 0.0
    %532 = vmatprep.subr.mxu0 0.0
    %533 = vmatpush1.msra.mxu0 0.0
    %534 = vmatprep.subr.mxu0 0.0
    %535 = vmatpush1.msra.mxu0 0.0
    %536 = vmatprep.subr.mxu0 0.0
    %537 = vmatpush1.msra.mxu0 0.0
    %538 = vmatprep.subr.mxu0 0.0
    %539 = vmatpush1.msra.mxu0 0.0
    %540 = vmatprep.subr.mxu0 0.0
    %541 = vmatpush1.msra.mxu0 0.0
    %542 = vmatprep.subr.mxu0 0.0
    %543 = vmatpush1.msra.mxu0 0.0
    %544 = vmatprep.subr.mxu0 0.0
    %545 = vmatpush1.msra.mxu0 0.0
    %546 = vmatprep.subr.mxu0 0.0
    %547 = vmatpush1.msra.mxu0 0.0
    %548 = vmatprep.subr.mxu0 0.0
    %549 = vmatpush1.msra.mxu0 0.0
    %550 = vmatprep.subr.mxu0 0.0
    %551 = vmatpush1.msra.mxu0 0.0
    %552 = vmatprep.subr.mxu0 0.0
    %553 = vmatpush1.msra.mxu0 0.0
    %554 = vmatprep.subr.mxu0 0.0
    %555 = vmatpush1.msra.mxu0 0.0
    %556 = vmatprep.subr.mxu0 0.0
    %557 = vmatpush1.msra.mxu0 0.0
    %558 = vmatprep.subr.mxu0 0.0
    %559 = vmatpush1.msra.mxu0 0.0
    %560 = vmatprep.subr.mxu0 0.0
    %561 = vmatpush1.msra.mxu0 0.0
    %562 = vmatprep.subr.mxu0 0.0
    %563 = vmatpush1.msra.mxu0 0.0
    %564 = vmatprep.subr.mxu0 0.0
    %565 = vmatpush1.msra.mxu0 0.0
    %566 = vmatprep.subr.mxu0 0.0
    %567 = vmatpush1.msra.mxu0 0.0
    %568 = vmatprep.subr.mxu0 0.0
    %569 = vmatpush1.msra.mxu0 0.0
    %570 = vmatprep.subr.mxu0 0.0
    %571 = vmatpush1.msra.mxu0 0.0
    %572 = vmatprep.subr.mxu0 0.0
    %573 = vmatpush1.msra.mxu0 0.0
    %574 = vmatprep.subr.mxu0 0.0
    %575 = vmatpush1.msra.mxu0 0.0
    %576 = vmatprep.subr.mxu0 0.0
    %577 = vmatpush1.msra.mxu0 0.0
    %578 = vmatprep.subr.mxu0 0.0
    %579 = vmatpush1.msra.mxu0 0.0
    %580 = vmatprep.subr.mxu0 0.0
    %581 = vmatpush1.msra.mxu0 0.0
    %582 = vmatprep.mubr.f32.mxu0 0.0
    %583 = vmatmul.mubr.f32.gmra.mrb[0].mxu0 %v516
    %v584 = vpop.f32.mrb[0].mxu0
    %v585 = vadd.f32 %v513, %v584
    %v586 = vpop.f32.mrb[0].mxu0
    %587 = vdwg.mxu0
    %v588 = vadd.f32 %v506, %v585
    %v589 = vld [vmem:[%s13] sm:$0xff]
    %v590 = vld [vmem:[%s13 + $0x8] sm:$0xff]
    %v591 = vld [vmem:[%s13 + $0x10] sm:$0xff]
    %v592 = vld [vmem:[%s13 + $0x18] sm:$0xff]
    %v593 = vld [vmem:[%s14] sm:$0x1]
    %vm594 = vcmask 125952
    %595 = vst.msk [vmem:[#allocation5] sm:$0xf] %vm594, %v588
    %v596 = vld [vmem:[#allocation5] ss:$2 sm:$0x3]
    %s597 = scalar_lea.vmem [#allocation5], 1
    %v598 = vld [vmem:[%s597] ss:$2 sm:$0x3]
    %600 = vrot.lane.b32.xlu0 %v598, 16
    %v601 = vpop.permute.xlu0 %600
    %v603 = vsel %vm335, %v596, %v601
    %v605 = vlaneseq
    %v606 = vshrl.u32 %v605, 7
    %v607 = vsub.s32 0, %v606
    %v608 = vrot.slane %v593, %v607
    %vm610 = vcmask 261120
    %v612 = vsel %vm610, %v603, 0
    %614 = vmatprep.subr.mxu0 0.0
    %615 = vmatpush1.msra.mxu0 %v589
    %616 = vmatprep.subr.mxu0 0.0
    %617 = vmatpush1.msra.mxu0 %v590
    %618 = vmatprep.subr.mxu0 0.0
    %619 = vmatpush1.msra.mxu0 %v591
    %620 = vmatprep.subr.mxu0 0.0
    %621 = vmatpush1.msra.mxu0 %v592
    %622 = vmatprep.subr.mxu0 0.0
    %623 = vmatpush1.msra.mxu0 0.0
    %624 = vmatprep.subr.mxu0 0.0
    %625 = vmatpush1.msra.mxu0 0.0
    %626 = vmatprep.subr.mxu0 0.0
    %627 = vmatpush1.msra.mxu0 0.0
    %628 = vmatprep.subr.mxu0 0.0
    %629 = vmatpush1.msra.mxu0 0.0
    %630 = vmatprep.subr.mxu0 0.0
    %631 = vmatpush1.msra.mxu0 0.0
    %632 = vmatprep.subr.mxu0 0.0
    %633 = vmatpush1.msra.mxu0 0.0
    %634 = vmatprep.subr.mxu0 0.0
    %635 = vmatpush1.msra.mxu0 0.0
    %636 = vmatprep.subr.mxu0 0.0
    %637 = vmatpush1.msra.mxu0 0.0
    %638 = vmatprep.subr.mxu0 0.0
    %639 = vmatpush1.msra.mxu0 0.0
    %640 = vmatprep.subr.mxu0 0.0
    %641 = vmatpush1.msra.mxu0 0.0
    %642 = vmatprep.subr.mxu0 0.0
    %643 = vmatpush1.msra.mxu0 0.0
    %644 = vmatprep.subr.mxu0 0.0
    %645 = vmatpush1.msra.mxu0 0.0
    %646 = vmatprep.subr.mxu0 0.0
    %647 = vmatpush1.msra.mxu0 0.0
    %648 = vmatprep.subr.mxu0 0.0
    %649 = vmatpush1.msra.mxu0 0.0
    %650 = vmatprep.subr.mxu0 0.0
    %651 = vmatpush1.msra.mxu0 0.0
    %652 = vmatprep.subr.mxu0 0.0
    %653 = vmatpush1.msra.mxu0 0.0
    %654 = vmatprep.subr.mxu0 0.0
    %655 = vmatpush1.msra.mxu0 0.0
    %656 = vmatprep.subr.mxu0 0.0
    %657 = vmatpush1.msra.mxu0 0.0
    %658 = vmatprep.subr.mxu0 0.0
    %659 = vmatpush1.msra.mxu0 0.0
    %660 = vmatprep.subr.mxu0 0.0
    %661 = vmatpush1.msra.mxu0 0.0
    %662 = vmatprep.subr.mxu0 0.0
    %663 = vmatpush1.msra.mxu0 0.0
    %664 = vmatprep.subr.mxu0 0.0
    %665 = vmatpush1.msra.mxu0 0.0
    %666 = vmatprep.subr.mxu0 0.0
    %667 = vmatpush1.msra.mxu0 0.0
    %668 = vmatprep.subr.mxu0 0.0
    %669 = vmatpush1.msra.mxu0 0.0
    %670 = vmatprep.subr.mxu0 0.0
    %671 = vmatpush1.msra.mxu0 0.0
    %672 = vmatprep.subr.mxu0 0.0
    %673 = vmatpush1.msra.mxu0 0.0
    %674 = vmatprep.subr.mxu0 0.0
    %675 = vmatpush1.msra.mxu0 0.0
    %676 = vmatprep.subr.mxu0 0.0
    %677 = vmatpush1.msra.mxu0 0.0
    %678 = vmatprep.mubr.f32.mxu0 0.0
    %679 = vmatmul.mubr.f32.gmra.mrb[0].mxu0 %v612
    %v680 = vpop.f32.mrb[0].mxu0
    %v681 = vadd.f32 %v608, %v680
    %v682 = vpop.f32.mrb[0].mxu0
    %683 = vdwg.mxu0
    %v684 = vmax.f32 %v681, 0.0
    %v685 = vadd.f32 %v596, %v598
    %v686 = vmul.f32 %v685, 0.5
    %v687 = vadd.f32 %v684, %v686
    %689 = vrot.lane.b32.xlu0 %v102, 16
    %v690 = vpop.permute.xlu0 %689
    %v692 = vsel %vm335, %v687, %v690
    %v693 = vld [vmem:[%s15] sm:$0xff]
    %v694 = vld [vmem:[%s15 + $0x8] sm:$0xff]
    %v695 = vld [vmem:[%s15 + $0x10] sm:$0xf]
    %v696 = vld [vmem:[%s16] sm:$0x1]
    %v698 = vlaneseq
    %v699 = vshrl.u32 %v698, 7
    %v700 = vsub.s32 0, %v699
    %v701 = vrot.slane %v696, %v700
    %vm703 = vcmask 162816
    %v705 = vsel %vm703, %v692, 0
    %v708 = vsel %vm235, %v695, 0
    %710 = vmatprep.subr.mxu0 0.0
    %711 = vmatpush1.msra.mxu0 %v693
    %712 = vmatprep.subr.mxu0 0.0
    %713 = vmatpush1.msra.mxu0 %v694
    %714 = vmatprep.subr.mxu0 0.0
    %715 = vmatpush1.msra.mxu0 %v708
    %716 = vmatprep.subr.mxu0 0.0
    %717 = vmatpush1.msra.mxu0 0.0
    %718 = vmatprep.subr.mxu0 0.0
    %719 = vmatpush1.msra.mxu0 0.0
    %720 = vmatprep.subr.mxu0 0.0
    %721 = vmatpush1.msra.mxu0 0.0
    %722 = vmatprep.subr.mxu0 0.0
    %723 = vmatpush1.msra.mxu0 0.0
    %724 = vmatprep.subr.mxu0 0.0
    %725 = vmatpush1.msra.mxu0 0.0
    %726 = vmatprep.subr.mxu0 0.0
    %727 = vmatpush1.msra.mxu0 0.0
    %728 = vmatprep.subr.mxu0 0.0
    %729 = vmatpush1.msra.mxu0 0.0
    %730 = vmatprep.subr.mxu0 0.0
    %731 = vmatpush1.msra.mxu0 0.0
    %732 = vmatprep.subr.mxu0 0.0
    %733 = vmatpush1.msra.mxu0 0.0
    %734 = vmatprep.subr.mxu0 0.0
    %735 = vmatpush1.msra.mxu0 0.0
    %736 = vmatprep.subr.mxu0 0.0
    %737 = vmatpush1.msra.mxu0 0.0
    %738 = vmatprep.subr.mxu0 0.0
    %739 = vmatpush1.msra.mxu0 0.0
    %740 = vmatprep.subr.mxu0 0.0
    %741 = vmatpush1.msra.mxu0 0.0
    %742 = vmatprep.subr.mxu0 0.0
    %743 = vmatpush1.msra.mxu0 0.0
    %744 = vmatprep.subr.mxu0 0.0
    %745 = vmatpush1.msra.mxu0 0.0
    %746 = vmatprep.subr.mxu0 0.0
    %747 = vmatpush1.msra.mxu0 0.0
    %748 = vmatprep.subr.mxu0 0.0
    %749 = vmatpush1.msra.mxu0 0.0
    %750 = vmatprep.subr.mxu0 0.0
    %751 = vmatpush1.msra.mxu0 0.0
    %752 = vmatprep.subr.mxu0 0.0
    %753 = vmatpush1.msra.mxu0 0.0
    %754 = vmatprep.subr.mxu0 0.0
    %755 = vmatpush1.msra.mxu0 0.0
    %756 = vmatprep.subr.mxu0 0.0
    %757 = vmatpush1.msra.mxu0 0.0
    %758 = vmatprep.subr.mxu0 0.0
    %759 = vmatpush1.msra.mxu0 0.0
    %760 = vmatprep.subr.mxu0 0.0
    %761 = vmatpush1.msra.mxu0 0.0
    %762 = vmatprep.subr.mxu0 0.0
    %763 = vmatpush1.msra.mxu0 0.0
    %764 = vmatprep.subr.mxu0 0.0
    %765 = vmatpush1.msra.mxu0 0.0
    %766 = vmatprep.subr.mxu0 0.0
    %767 = vmatpush1.msra.mxu0 0.0
    %768 = vmatprep.subr.mxu0 0.0
    %769 = vmatpush1.msra.mxu0 0.0
    %770 = vmatprep.subr.mxu0 0.0
    %771 = vmatpush1.msra.mxu0 0.0
    %772 = vmatprep.subr.mxu0 0.0
    %773 = vmatpush1.msra.mxu0 0.0
    %774 = vmatprep.mubr.f32.mxu0 0.0
    %775 = vmatmul.mubr.f32.gmra.mrb[0].mxu0 %v705
    %v776 = vpop.f32.mrb[0].mxu0
    %v777 = vadd.f32 %v701, %v776
    %v778 = vpop.f32.mrb[0].mxu0
    %779 = vdwg.mxu0
    %v780 = vmax.f32 %v777, 0.0
    %v781 = vld [vmem:[%s17] sm:$0xff]
    %v782 = vld [vmem:[%s17 + $0x8] sm:$0xff]
    %v783 = vld [vmem:[%s17 + $0x10] sm:$0xff]
    %v784 = vld [vmem:[%s17 + $0x18] sm:$0xff]
    %v785 = vld [vmem:[%s18] sm:$0x1]
    %v787 = vlaneseq
    %v788 = vshrl.u32 %v787, 7
    %v789 = vsub.s32 0, %v788
    %v790 = vrot.slane %v785, %v789
    %v793 = vsel %vm610, %v780, 0
    %795 = vmatprep.subr.mxu0 0.0
    %796 = vmatpush1.msra.mxu0 %v781
    %797 = vmatprep.subr.mxu0 0.0
    %798 = vmatpush1.msra.mxu0 %v782
    %799 = vmatprep.subr.mxu0 0.0
    %800 = vmatpush1.msra.mxu0 %v783
    %801 = vmatprep.subr.mxu0 0.0
    %802 = vmatpush1.msra.mxu0 %v784
    %803 = vmatprep.subr.mxu0 0.0
    %804 = vmatpush1.msra.mxu0 0.0
    %805 = vmatprep.subr.mxu0 0.0
    %806 = vmatpush1.msra.mxu0 0.0
    %807 = vmatprep.subr.mxu0 0.0
    %808 = vmatpush1.msra.mxu0 0.0
    %809 = vmatprep.subr.mxu0 0.0
    %810 = vmatpush1.msra.mxu0 0.0
    %811 = vmatprep.subr.mxu0 0.0
    %812 = vmatpush1.msra.mxu0 0.0
    %813 = vmatprep.subr.mxu0 0.0
    %814 = vmatpush1.msra.mxu0 0.0
    %815 = vmatprep.subr.mxu0 0.0
    %816 = vmatpush1.msra.mxu0 0.0
    %817 = vmatprep.subr.mxu0 0.0
    %818 = vmatpush1.msra.mxu0 0.0
    %819 = vmatprep.subr.mxu0 0.0
    %820 = vmatpush1.msra.mxu0 0.0
    %821 = vmatprep.subr.mxu0 0.0
    %822 = vmatpush1.msra.mxu0 0.0
    %823 = vmatprep.subr.mxu0 0.0
    %824 = vmatpush1.msra.mxu0 0.0
    %825 = vmatprep.subr.mxu0 0.0
    %826 = vmatpush1.msra.mxu0 0.0
    %827 = vmatprep.subr.mxu0 0.0
    %828 = vmatpush1.msra.mxu0 0.0
    %829 = vmatprep.subr.mxu0 0.0
    %830 = vmatpush1.msra.mxu0 0.0
    %831 = vmatprep.subr.mxu0 0.0
    %832 = vmatpush1.msra.mxu0 0.0
    %833 = vmatprep.subr.mxu0 0.0
    %834 = vmatpush1.msra.mxu0 0.0
    %835 = vmatprep.subr.mxu0 0.0
    %836 = vmatpush1.msra.mxu0 0.0
    %837 = vmatprep.subr.mxu0 0.0
    %838 = vmatpush1.msra.mxu0 0.0
    %839 = vmatprep.subr.mxu0 0.0
    %840 = vmatpush1.msra.mxu0 0.0
    %841 = vmatprep.subr.mxu0 0.0
    %842 = vmatpush1.msra.mxu0 0.0
    %843 = vmatprep.subr.mxu0 0.0
    %844 = vmatpush1.msra.mxu0 0.0
    %845 = vmatprep.subr.mxu0 0.0
    %846 = vmatpush1.msra.mxu0 0.0
    %847 = vmatprep.subr.mxu0 0.0
    %848 = vmatpush1.msra.mxu0 0.0
    %849 = vmatprep.subr.mxu0 0.0
    %850 = vmatpush1.msra.mxu0 0.0
    %851 = vmatprep.subr.mxu0 0.0
    %852 = vmatpush1.msra.mxu0 0.0
    %853 = vmatprep.subr.mxu0 0.0
    %854 = vmatpush1.msra.mxu0 0.0
    %855 = vmatprep.subr.mxu0 0.0
    %856 = vmatpush1.msra.mxu0 0.0
    %857 = vmatprep.subr.mxu0 0.0
    %858 = vmatpush1.msra.mxu0 0.0
    %859 = vmatprep.mubr.f32.mxu0 0.0
    %860 = vmatmul.mubr.f32.gmra.mrb[0].mxu0 %v793
    %v861 = vpop.f32.mrb[0].mxu0
    %v862 = vadd.f32 %v790, %v861
    %v863 = vpop.f32.mrb[0].mxu0
    %864 = vdwg.mxu0
    %v865 = vmax.f32 %v862, 0.0
    %v866 = vld [vmem:[%s19] sm:$0xff]
    %v867 = vld [vmem:[%s19 + $0x8] sm:$0xff]
    %v868 = vld [vmem:[%s19 + $0x10] sm:$0xff]
    %v869 = vld [vmem:[%s19 + $0x18] sm:$0xff]
    %v870 = vld [vmem:[%s20] sm:$0x1]
    %v871 = vld [vmem:[%s21] sm:$0xff]
    %v872 = vld [vmem:[%s21 + $0x8] sm:$0xff]
    %v873 = vld [vmem:[%s21 + $0x10] sm:$0xff]
    %v874 = vld [vmem:[%s21 + $0x18] sm:$0xff]
    %v875 = vld [vmem:[%s22] sm:$0x1]
    %v877 = vlaneseq
    %v878 = vshrl.u32 %v877, 7
    %v879 = vsub.s32 0, %v878
    %v880 = vrot.slane %v870, %v879
    %v883 = vsel %vm610, %v865, 0
    %885 = vmatprep.subr.mxu0 0.0
    %886 = vmatpush1.msra.mxu0 %v866
    %887 = vmatprep.subr.mxu0 0.0
    %888 = vmatpush1.msra.mxu0 %v867
    %889 = vmatprep.subr.mxu0 0.0
    %890 = vmatpush1.msra.mxu0 %v868
    %891 = vmatprep.subr.mxu0 0.0
    %892 = vmatpush1.msra.mxu0 %v869
    %893 = vmatprep.subr.mxu0 0.0
    %894 = vmatpush1.msra.mxu0 0.0
    %895 = vmatprep.subr.mxu0 0.0
    %896 = vmatpush1.msra.mxu0 0.0
    %897 = vmatprep.subr.mxu0 0.0
    %898 = vmatpush1.msra.mxu0 0.0
    %899 = vmatprep.subr.mxu0 0.0
    %900 = vmatpush1.msra.mxu0 0.0
    %901 = vmatprep.subr.mxu0 0.0
    %902 = vmatpush1.msra.mxu0 0.0
    %903 = vmatprep.subr.mxu0 0.0
    %904 = vmatpush1.msra.mxu0 0.0
    %905 = vmatprep.subr.mxu0 0.0
    %906 = vmatpush1.msra.mxu0 0.0
    %907 = vmatprep.subr.mxu0 0.0
    %908 = vmatpush1.msra.mxu0 0.0
    %909 = vmatprep.subr.mxu0 0.0
    %910 = vmatpush1.msra.mxu0 0.0
    %911 = vmatprep.subr.mxu0 0.0
    %912 = vmatpush1.msra.mxu0 0.0
    %913 = vmatprep.subr.mxu0 0.0
    %914 = vmatpush1.msra.mxu0 0.0
    %915 = vmatprep.subr.mxu0 0.0
    %916 = vmatpush1.msra.mxu0 0.0
    %917 = vmatprep.subr.mxu0 0.0
    %918 = vmatpush1.msra.mxu0 0.0
    %919 = vmatprep.subr.mxu0 0.0
    %920 = vmatpush1.msra.mxu0 0.0
    %921 = vmatprep.subr.mxu0 0.0
    %922 = vmatpush1.msra.mxu0 0.0
    %923 = vmatprep.subr.mxu0 0.0
    %924 = vmatpush1.msra.mxu0 0.0
    %925 = vmatprep.subr.mxu0 0.0
    %926 = vmatpush1.msra.mxu0 0.0
    %927 = vmatprep.subr.mxu0 0.0
    %928 = vmatpush1.msra.mxu0 0.0
    %929 = vmatprep.subr.mxu0 0.0
    %930 = vmatpush1.msra.mxu0 0.0
    %931 = vmatprep.subr.mxu0 0.0
    %932 = vmatpush1.msra.mxu0 0.0
    %933 = vmatprep.subr.mxu0 0.0
    %934 = vmatpush1.msra.mxu0 0.0
    %935 = vmatprep.subr.mxu0 0.0
    %936 = vmatpush1.msra.mxu0 0.0
    %937 = vmatprep.subr.mxu0 0.0
    %938 = vmatpush1.msra.mxu0 0.0
    %939 = vmatprep.subr.mxu0 0.0
    %940 = vmatpush1.msra.mxu0 0.0
    %941 = vmatprep.subr.mxu0 0.0
    %942 = vmatpush1.msra.mxu0 0.0
    %943 = vmatprep.subr.mxu0 0.0
    %944 = vmatpush1.msra.mxu0 0.0
    %945 = vmatprep.subr.mxu0 0.0
    %946 = vmatpush1.msra.mxu0 0.0
    %947 = vmatprep.subr.mxu0 0.0
    %948 = vmatpush1.msra.mxu0 0.0
    %949 = vmatprep.mubr.f32.mxu0 0.0
    %950 = vmatmul.mubr.f32.gmra.mrb[0].mxu0 %v883
    %v951 = vpop.f32.mrb[0].mxu0
    %v952 = vadd.f32 %v880, %v951
    %v953 = vpop.f32.mrb[0].mxu0
    %954 = vdwg.mxu0
    %v956 = vlaneseq
    %v957 = vshrl.u32 %v956, 7
    %v958 = vsub.s32 0, %v957
    %v959 = vrot.slane %v875, %v958
    %961 = vmatprep.subr.mxu0 0.0
    %962 = vmatpush1.msra.mxu0 %v871
    %963 = vmatprep.subr.mxu0 0.0
    %964 = vmatpush1.msra.mxu0 %v872
    %965 = vmatprep.subr.mxu0 0.0
    %966 = vmatpush1.msra.mxu0 %v873
    %967 = vmatprep.subr.mxu0 0.0
    %968 = vmatpush1.msra.mxu0 %v874
    %969 = vmatprep.subr.mxu0 0.0
    %970 = vmatpush1.msra.mxu0 0.0
    %971 = vmatprep.subr.mxu0 0.0
    %972 = vmatpush1.msra.mxu0 0.0
    %973 = vmatprep.subr.mxu0 0.0
    %974 = vmatpush1.msra.mxu0 0.0
    %975 = vmatprep.subr.mxu0 0.0
    %976 = vmatpush1.msra.mxu0 0.0
    %977 = vmatprep.subr.mxu0 0.0
    %978 = vmatpush1.msra.mxu0 0.0
    %979 = vmatprep.subr.mxu0 0.0
    %980 = vmatpush1.msra.mxu0 0.0
    %981 = vmatprep.subr.mxu0 0.0
    %982 = vmatpush1.msra.mxu0 0.0
    %983 = vmatprep.subr.mxu0 0.0
    %984 = vmatpush1.msra.mxu0 0.0
    %985 = vmatprep.subr.mxu0 0.0
    %986 = vmatpush1.msra.mxu0 0.0
    %987 = vmatprep.subr.mxu0 0.0
    %988 = vmatpush1.msra.mxu0 0.0
    %989 = vmatprep.subr.mxu0 0.0
    %990 = vmatpush1.msra.mxu0 0.0
    %991 = vmatprep.subr.mxu0 0.0
    %992 = vmatpush1.msra.mxu0 0.0
    %993 = vmatprep.subr.mxu0 0.0
    %994 = vmatpush1.msra.mxu0 0.0
    %995 = vmatprep.subr.mxu0 0.0
    %996 = vmatpush1.msra.mxu0 0.0
    %997 = vmatprep.subr.mxu0 0.0
    %998 = vmatpush1.msra.mxu0 0.0
    %999 = vmatprep.subr.mxu0 0.0
    %1000 = vmatpush1.msra.mxu0 0.0
    %1001 = vmatprep.subr.mxu0 0.0
    %1002 = vmatpush1.msra.mxu0 0.0
    %1003 = vmatprep.subr.mxu0 0.0
    %1004 = vmatpush1.msra.mxu0 0.0
    %1005 = vmatprep.subr.mxu0 0.0
    %1006 = vmatpush1.msra.mxu0 0.0
    %1007 = vmatprep.subr.mxu0 0.0
    %1008 = vmatpush1.msra.mxu0 0.0
    %1009 = vmatprep.subr.mxu0 0.0
    %1010 = vmatpush1.msra.mxu0 0.0
    %1011 = vmatprep.subr.mxu0 0.0
    %1012 = vmatpush1.msra.mxu0 0.0
    %1013 = vmatprep.subr.mxu0 0.0
    %1014 = vmatpush1.msra.mxu0 0.0
    %1015 = vmatprep.subr.mxu0 0.0
    %1016 = vmatpush1.msra.mxu0 0.0
    %1017 = vmatprep.subr.mxu0 0.0
    %1018 = vmatpush1.msra.mxu0 0.0
    %1019 = vmatprep.subr.mxu0 0.0
    %1020 = vmatpush1.msra.mxu0 0.0
    %1021 = vmatprep.subr.mxu0 0.0
    %1022 = vmatpush1.msra.mxu0 0.0
    %1023 = vmatprep.subr.mxu0 0.0
    %1024 = vmatpush1.msra.mxu0 0.0
    %1025 = vmatprep.mubr.f32.mxu0 0.0
    %1026 = vmatmul.mubr.f32.gmra.mrb[0].mxu0 %v883
    %v1027 = vpop.f32.mrb[0].mxu0
    %v1028 = vadd.f32 %v959, %v1027
    %v1029 = vpop.f32.mrb[0].mxu0
    %1030 = vdwg.mxu0
    %v1031 = vmax.f32 %v1028, -20.0
    %v1032 = vmin.f32 %v1031, 2.0
    %v1033 = vmul.f32 %v1032, 1.442695
    %v1034 = vpow.pop %v1033
    %v1035 = vld [vmem:[%s2] sm:$0x3]
    %v1036 = vmul.f32 %v1034, %v1035
    %v1037 = vadd.f32 %v952, %v1036
    %v1038 = vsub.f32 %v1037, %v952
    %v1039 = vrcp.pop %v1034
    %v1040 = vmul.f32 %v1038, %v1039
    %v1041 = vmul.f32 %v1040, -0.5
    %v1042 = vmul.f32 %v1041, %v1040
    %v1043 = vsub.f32 %v1042, %v1032
    %v1044 = vsub.f32 %v1043, 0.9189385
    %vm1045 = vcmask 25600
    %v1046 = vsel %vm1045, %v1044, 0.0
    %1047 = vadd.xlane.f32.xlu0 %v1046
    %v1048 = vpop.xlane.xlu0 %1047
    %v1049 = vmul.f32 %v1037, -2.0
    %v1050 = vmax.f32 %v1049, 0.0
    %v1051 = vand.u32 2147483647, %v1049
    %v1052 = vsub.f32 0.0, %v1051
    %v1053 = vmul.f32 %v1052, 1.442695
    %v1054 = vpow.pop %v1053
    %v1055 = vadd.f32 %v1054, 1.0
    %v1056 = vlog2.pop %v1055
    %v1057 = vmul.f32 %v1056, 0.6931472
    %v1058 = vadd.f32 %v1050, %v1057
    %v1059 = vsub.f32 0.6931472, %v1037
    %v1060 = vsub.f32 %v1059, %v1058
    %v1061 = vmul.f32 %v1060, 2.0
    %v1062 = vsel %vm1045, %v1061, 0.0
    %1063 = vadd.xlane.f32.xlu0 %v1062
    %v1064 = vpop.xlane.xlu0 %1063
    %v1065 = vsub.f32 %v1048, %v1064
    %v1066 = vsub.f32 %v1065, 0.6931472
    %v1067 = vtanh.pop %v1037
    %v1068 = vadd.f32 %v1067, 1.0
    %v1069 = vmul.f32 %v1068, 0.5
    %v1070 = vmul.f32 %v1069, 4.0
    %v1071 = vadd.f32 %v1070, -2.0
    %1072 = vst.msk [vmem:[#allocation6] sm:$0x3] %vm1045, %v1071
    %vm1073 = vcmask 1024
    %1074 = vst.msk [vmem:[%s24] sm:$0x3] %vm1073, %v1066
    // Predicated region
    $region94: #{tpu_custom_call.1} parent=1 // pred_check
      _
    $region95: #{tpu_custom_call.1} parent=1 // pred_check_branch
      %1076 = sbr.rel (0) target = $region97
    $region96: #{tpu_custom_call.1} parent=1 // pred_region
      %s1078 = ssub.s32 32, 32
      %1079 = vsyncadd [#allocation7], %s1078
      %s1081 = sshll.u32 [#allocation6], 4
      %s1082 = int_to_ptr.vmem [resolvable:$true] %s1081
      %1084 = dma.vmem_to_hbm [thread:$0]  %s1082, 32, %s23, [#allocation7]
    $region97: #{tpu_custom_call.1} parent=1 // pred_fallthru
      _
    // Predicated region
    $region98: #{tpu_custom_call.1} parent=1 // pred_check
      _
    $region99: #{tpu_custom_call.1} parent=1 // pred_check_branch
      %1086 = sbr.rel (0) target = $region101
    $region100: #{tpu_custom_call.1} parent=1 // pred_region
      _
    $region101: #{tpu_custom_call.1} parent=1 // pred_fallthru
      _
    // Predicated region
    $region102: #{tpu_custom_call.1} parent=1 // pred_check
      _
    $region103: #{tpu_custom_call.1} parent=1 // pred_check_branch
      %1088 = sbr.rel (0) target = $region105
    $region104: #{tpu_custom_call.1} parent=1 // pred_region
      %1089 = dma.done [#allocation7], 32
    $region105: #{tpu_custom_call.1} parent=1 // pred_fallthru
      _
    // Predicated region
    $region106: #{tpu_custom_call.1} parent=1 // pred_check
      _
    $region107: #{tpu_custom_call.1} parent=1 // pred_check_branch
      %1091 = sbr.rel (0) target = $region109
    $region108: #{tpu_custom_call.1} parent=1 // pred_region
      _
    $region109: #{tpu_custom_call.1} parent=1 // pred_fallthru
      _
    %1092 = vsyncpa [#allocation7], 1

</llo_original>
